<compile_context>
chip_gen: v7x
topology: tpu7x:2x2x1
jax: 0.10.0
libtpu: 0.0.40
codegen_flags: <defaults>
</compile_context>

<pallas_src>
import functools

import jax
import jax.numpy as jnp
from jax import lax
from jax.experimental import pallas as pl
from jax.experimental.pallas import tpu as pltpu

K = 3  # conv kernel size (3x3, stride 1, padding 1)


def _make_boundary_masks(H, W):
    """(9, H*W) f32 masks, row t = kh*3+kw, zeroing output positions whose source
    tap falls outside the image (implements the zero padding in-kernel)."""
    L = H * W
    lane = jnp.arange(L, dtype=jnp.int32)
    h_idx = lane // W
    w_idx = lane % W
    rows = []
    for kh in range(K):
        for kw in range(K):
            dh, dw = kh - 1, kw - 1
            ok = jnp.ones((L,), jnp.bool_)
            if dh == -1:
                ok = ok & (h_idx >= 1)
            elif dh == 1:
                ok = ok & (h_idx <= H - 2)
            if dw == -1:
                ok = ok & (w_idx >= 1)
            elif dw == 1:
                ok = ok & (w_idx <= W - 2)
            rows.append(ok.astype(jnp.float32))
    return jnp.stack(rows, axis=0)  # (9, L)


def _conv3x3_all_channels(src_chans, w_ref, b_ref, masks, W, L):
    """One 3x3 same-conv over all channels in a single (ci, kh, kw) pass.

    src_chans: list of C slabs, each (nb, L) f32 (images in sublanes, flat spatial
    in lanes).  w_ref: (C*C*9,) SMEM flattened OIHW weights.  b_ref: (C,) SMEM bias.
    masks: list of 9 (1, L) f32 boundary masks.  Returns C pre-activation slabs.
    """
    C = len(src_chans)
    nb = src_chans[0].shape[0]
    # Accumulators start from the bias (saves a full-slab add at the end).
    accs = [jnp.full((nb, L), b_ref[co], jnp.float32) for co in range(C)]
    for ci in range(C):
        base = src_chans[ci]
        for kh in range(K):
            for kw in range(K):
                d = (kh - 1) * W + (kw - 1)  # flat lane shift of this tap
                if d == 0:
                    sh = base
                else:
                    # out[p] = base[p + d]; wrapped / cross-row lanes are zeroed
                    # by the boundary mask below (in-kernel zero padding).
                    sh = pltpu.roll(base, (-d) % L, axis=1)
                t = kh * K + kw
                if t != (K * K) // 2:  # center tap needs no mask
                    sh = sh * masks[t]
                # One shifted slab feeds all C output-channel accumulators.
                for co in range(C):
                    wv = w_ref[((co * C + ci) * K + kh) * K + kw]
                    accs[co] = accs[co] + wv * sh
    return accs


def resblock_kernel(x_ref, m_ref, w1_ref, b1_ref, w2_ref, b2_ref, out_ref, *, W):
    # x_ref / out_ref: (nb, C, H*W) VMEM, lane-dense (H*W multiple of 128),
    # sublane-dense per-channel slabs of nb images.
    nb, C, L = x_ref.shape

    # Precomputed boundary masks (constant across grid steps), one (1, L) row per tap.
    masks = [m_ref[t:t + 1, :] for t in range(K * K)]

    # Per-channel input slabs (also the residual source).
    x_chans = [x_ref[:, ci, :] for ci in range(C)]

    # conv1 + relu1 — results stay in vregs, no VMEM scratch round-trip.
    h = _conv3x3_all_channels(x_chans, w1_ref, b1_ref, masks, W, L)
    h = [jnp.maximum(a, 0.0) for a in h]

    # conv2 + relu2 + residual (residual read straight from the unpadded input).
    y = _conv3x3_all_channels(h, w2_ref, b2_ref, masks, W, L)
    for co in range(C):
        out_ref[:, co, :] = jnp.maximum(y[co], 0.0) + x_chans[co]


def _pick_images_per_step(N):
    """Images per grid step: collapse small batches into one program (fills up to 8
    sublanes, no per-step overhead); for large N use a multiple of 8 per step while
    keeping >= 2 programs so v7x's 2 TensorCores both get work."""
    if N <= 8:
        return N
    for cand in (128, 64, 32, 16, 8):
        if N % cand == 0 and N // cand >= 2:
            return cand
    return 8  # non-divisible large N: pad up to a multiple of 8 in the wrapper


def simple_residual_block(x, w1, b1, w2, b2):
    """x: (N, 3, H, W) NCHW. Weights OIHW (3,3,3,3), biases (3,). Returns f32 NCHW."""
    N, C, H, W = x.shape
    L = H * W
    # Free reshape for contiguous f32 NCHW (dims merged) — no pad / transpose copies.
    xf = x.astype(jnp.float32).reshape(N, C, L)

    nb = _pick_images_per_step(N)
    n_pad = (-N) % nb
    if n_pad:
        xf = jnp.concatenate([xf, jnp.zeros((n_pad, C, L), jnp.float32)], axis=0)
    Np = N + n_pad
    grid = (Np // nb,)

    masks = _make_boundary_masks(H, W)  # (9, L) f32, computed once on host

    kernel = functools.partial(resblock_kernel, W=W)
    out = pl.pallas_call(
        kernel,
        out_shape=jax.ShapeDtypeStruct((Np, C, L), jnp.float32),
        grid=grid,
        in_specs=[
            pl.BlockSpec((nb, C, L), lambda n: (n, 0, 0)),           # input tile (VMEM)
            pl.BlockSpec((K * K, L), lambda n: (0, 0)),              # boundary masks (VMEM, resident)
            pl.BlockSpec(memory_space=pltpu.MemorySpace.SMEM),       # w1 (flat)
            pl.BlockSpec(memory_space=pltpu.MemorySpace.SMEM),       # b1
            pl.BlockSpec(memory_space=pltpu.MemorySpace.SMEM),       # w2 (flat)
            pl.BlockSpec(memory_space=pltpu.MemorySpace.SMEM),       # b2
        ],
        out_specs=pl.BlockSpec((nb, C, L), lambda n: (n, 0, 0)),
        compiler_params=pltpu.CompilerParams(dimension_semantics=("parallel",)),
    )(
        xf,
        masks,
        w1.reshape(-1).astype(jnp.float32), b1.astype(jnp.float32),
        w2.reshape(-1).astype(jnp.float32), b2.astype(jnp.float32),
    )
    if n_pad:
        out = out[:N]
    return out.reshape(N, C, H, W)


def _reference(x, w1, b1, w2, b2):
    """Pure-JAX reference matching the PyTorch module (NCHW / OIHW)."""
    dn = ("NCHW", "OIHW", "NCHW")
    y = lax.conv_general_dilated(x, w1, (1, 1), ((1, 1), (1, 1)),
                                 dimension_numbers=dn) + b1[None, :, None, None]
    y = jnp.maximum(y, 0.0)
    y = lax.conv_general_dilated(y, w2, (1, 1), ((1, 1), (1, 1)),
                                 dimension_numbers=dn) + b2[None, :, None, None]
    return jnp.maximum(y, 0.0) + x


if __name__ == "__main__":
    key = jax.random.PRNGKey(0)
    kx, k1, k2, k3, k4 = jax.random.split(key, 5)

    N, C, H, W = 2, 3, 16, 16  # module requires in_channels = out_channels = 3
    x = jax.random.normal(kx, (N, C, H, W), jnp.float32)

    # Deterministic synthetic parameters (Conv2d(3,3,3): OIHW weights, (3,) bias).
    w1 = 0.1 * jax.random.normal(k1, (C, C, K, K), jnp.float32)
    b1 = 0.1 * jax.random.normal(k2, (C,), jnp.float32)
    w2 = 0.1 * jax.random.normal(k3, (C, C, K, K), jnp.float32)
    b2 = 0.1 * jax.random.normal(k4, (C,), jnp.float32)

    out = jax.block_until_ready(simple_residual_block(x, w1, b1, w2, b2))
    ref = jax.block_until_ready(_reference(x, w1, b1, w2, b2))

    assert out.shape == (N, C, H, W) and out.dtype == jnp.float32
    assert jnp.allclose(out, ref, atol=1e-5, rtol=1e-5), "Pallas output mismatch vs reference"

    print("KERNEL_OK")
</pallas_src>

<mosaic_0001>
module attributes {stable_mosaic.version = 11 : i64} {
  func.func @resblock_kernel(%arg0: i32, %arg1: memref<2x3x256xf32, #tpu.memory_space<vmem>>, %arg2: memref<9x256xf32, #tpu.memory_space<vmem>>, %arg3: memref<81xf32, #tpu.memory_space<smem>>, %arg4: memref<3xf32, #tpu.memory_space<smem>>, %arg5: memref<81xf32, #tpu.memory_space<smem>>, %arg6: memref<3xf32, #tpu.memory_space<smem>>, %arg7: memref<2x3x256xf32, #tpu.memory_space<vmem>>) attributes {dimension_semantics = [#tpu.dimension_semantics<parallel>], iteration_bounds = array<i64: 1>, scalar_prefetch = 0 : i64, scratch_operands = 0 : i64, tpu.core_type = #tpu.core_type<tc>, window_params = [{transform_indices = @transform_0, window_bounds = array<i64: 2, 3, 256>}, {pipeline_mode = #tpu.pipeline_mode<synchronous>, transform_indices = @transform_1, window_bounds = array<i64: 9, 256>}, {transform_indices = @transform_2, window_bounds = array<i64: 81>}, {transform_indices = @transform_3, window_bounds = array<i64: 3>}, {transform_indices = @transform_4, window_bounds = array<i64: 81>}, {transform_indices = @transform_5, window_bounds = array<i64: 3>}, {transform_indices = @transform_6, window_bounds = array<i64: 2, 3, 256>}]} {
    %c0 = arith.constant 0 : index
    %c0_0 = arith.constant 0 : index
    %0 = vector.load %arg2[%c0, %c0_0] : memref<9x256xf32, #tpu.memory_space<vmem>>, vector<1x256xf32>
    %c1 = arith.constant 1 : index
    %c0_1 = arith.constant 0 : index
    %1 = vector.load %arg2[%c1, %c0_1] : memref<9x256xf32, #tpu.memory_space<vmem>>, vector<1x256xf32>
    %c2 = arith.constant 2 : index
    %c0_2 = arith.constant 0 : index
    %2 = vector.load %arg2[%c2, %c0_2] : memref<9x256xf32, #tpu.memory_space<vmem>>, vector<1x256xf32>
    %c3 = arith.constant 3 : index
    %c0_3 = arith.constant 0 : index
    %3 = vector.load %arg2[%c3, %c0_3] : memref<9x256xf32, #tpu.memory_space<vmem>>, vector<1x256xf32>
    %c5 = arith.constant 5 : index
    %c0_4 = arith.constant 0 : index
    %4 = vector.load %arg2[%c5, %c0_4] : memref<9x256xf32, #tpu.memory_space<vmem>>, vector<1x256xf32>
    %c6 = arith.constant 6 : index
    %c0_5 = arith.constant 0 : index
    %5 = vector.load %arg2[%c6, %c0_5] : memref<9x256xf32, #tpu.memory_space<vmem>>, vector<1x256xf32>
    %c7 = arith.constant 7 : index
    %c0_6 = arith.constant 0 : index
    %6 = vector.load %arg2[%c7, %c0_6] : memref<9x256xf32, #tpu.memory_space<vmem>>, vector<1x256xf32>
    %c8 = arith.constant 8 : index
    %c0_7 = arith.constant 0 : index
    %7 = vector.load %arg2[%c8, %c0_7] : memref<9x256xf32, #tpu.memory_space<vmem>>, vector<1x256xf32>
    %c0_8 = arith.constant 0 : index
    %c0_9 = arith.constant 0 : index
    %c0_10 = arith.constant 0 : index
    %8 = vector.load %arg1[%c0_8, %c0_9, %c0_10] : memref<2x3x256xf32, #tpu.memory_space<vmem>>, vector<2x1x256xf32>
    %9 = vector.shape_cast %8 : vector<2x1x256xf32> to vector<2x256xf32>
    %c0_11 = arith.constant 0 : index
    %c1_12 = arith.constant 1 : index
    %c0_13 = arith.constant 0 : index
    %10 = vector.load %arg1[%c0_11, %c1_12, %c0_13] : memref<2x3x256xf32, #tpu.memory_space<vmem>>, vector<2x1x256xf32>
    %11 = vector.shape_cast %10 : vector<2x1x256xf32> to vector<2x256xf32>
    %c0_14 = arith.constant 0 : index
    %c2_15 = arith.constant 2 : index
    %c0_16 = arith.constant 0 : index
    %12 = vector.load %arg1[%c0_14, %c2_15, %c0_16] : memref<2x3x256xf32, #tpu.memory_space<vmem>>, vector<2x1x256xf32>
    %13 = vector.shape_cast %12 : vector<2x1x256xf32> to vector<2x256xf32>
    %c0_17 = arith.constant 0 : index
    %14 = memref.load %arg4[%c0_17] : memref<3xf32, #tpu.memory_space<smem>>
    %15 = vector.broadcast %14 : f32 to vector<2x256xf32>
    %c1_18 = arith.constant 1 : index
    %16 = memref.load %arg4[%c1_18] : memref<3xf32, #tpu.memory_space<smem>>
    %17 = vector.broadcast %16 : f32 to vector<2x256xf32>
    %c2_19 = arith.constant 2 : index
    %18 = memref.load %arg4[%c2_19] : memref<3xf32, #tpu.memory_space<smem>>
    %19 = vector.broadcast %18 : f32 to vector<2x256xf32>
    %c17_i32 = arith.constant 17 : i32
    %20 = tpu.dynamic_rotate %9 by %c17_i32 dim 1 : vector<2x256xf32>, i32 -> vector<2x256xf32>
    %21 = vector.broadcast %0 : vector<1x256xf32> to vector<2x256xf32>
    %22 = arith.mulf %20, %21 : vector<2x256xf32>
    %c0_20 = arith.constant 0 : index
    %23 = memref.load %arg3[%c0_20] : memref<81xf32, #tpu.memory_space<smem>>
    %24 = vector.broadcast %23 : f32 to vector<2x256xf32>
    %25 = arith.mulf %24, %22 : vector<2x256xf32>
    %26 = arith.addf %15, %25 : vector<2x256xf32>
    %c27 = arith.constant 27 : index
    %27 = memref.load %arg3[%c27] : memref<81xf32, #tpu.memory_space<smem>>
    %28 = vector.broadcast %27 : f32 to vector<2x256xf32>
    %29 = arith.mulf %28, %22 : vector<2x256xf32>
    %30 = arith.addf %17, %29 : vector<2x256xf32>
    %c54 = arith.constant 54 : index
    %31 = memref.load %arg3[%c54] : memref<81xf32, #tpu.memory_space<smem>>
    %32 = vector.broadcast %31 : f32 to vector<2x256xf32>
    %33 = arith.mulf %32, %22 : vector<2x256xf32>
    %34 = arith.addf %19, %33 : vector<2x256xf32>
    %c16_i32 = arith.constant 16 : i32
    %35 = tpu.dynamic_rotate %9 by %c16_i32 dim 1 : vector<2x256xf32>, i32 -> vector<2x256xf32>
    %36 = vector.broadcast %1 : vector<1x256xf32> to vector<2x256xf32>
    %37 = arith.mulf %35, %36 : vector<2x256xf32>
    %c1_21 = arith.constant 1 : index
    %38 = memref.load %arg3[%c1_21] : memref<81xf32, #tpu.memory_space<smem>>
    %39 = vector.broadcast %38 : f32 to vector<2x256xf32>
    %40 = arith.mulf %39, %37 : vector<2x256xf32>
    %41 = arith.addf %26, %40 : vector<2x256xf32>
    %c28 = arith.constant 28 : index
    %42 = memref.load %arg3[%c28] : memref<81xf32, #tpu.memory_space<smem>>
    %43 = vector.broadcast %42 : f32 to vector<2x256xf32>
    %44 = arith.mulf %43, %37 : vector<2x256xf32>
    %45 = arith.addf %30, %44 : vector<2x256xf32>
    %c55 = arith.constant 55 : index
    %46 = memref.load %arg3[%c55] : memref<81xf32, #tpu.memory_space<smem>>
    %47 = vector.broadcast %46 : f32 to vector<2x256xf32>
    %48 = arith.mulf %47, %37 : vector<2x256xf32>
    %49 = arith.addf %34, %48 : vector<2x256xf32>
    %c15_i32 = arith.constant 15 : i32
    %50 = tpu.dynamic_rotate %9 by %c15_i32 dim 1 : vector<2x256xf32>, i32 -> vector<2x256xf32>
    %51 = vector.broadcast %2 : vector<1x256xf32> to vector<2x256xf32>
    %52 = arith.mulf %50, %51 : vector<2x256xf32>
    %c2_22 = arith.constant 2 : index
    %53 = memref.load %arg3[%c2_22] : memref<81xf32, #tpu.memory_space<smem>>
    %54 = vector.broadcast %53 : f32 to vector<2x256xf32>
    %55 = arith.mulf %54, %52 : vector<2x256xf32>
    %56 = arith.addf %41, %55 : vector<2x256xf32>
    %c29 = arith.constant 29 : index
    %57 = memref.load %arg3[%c29] : memref<81xf32, #tpu.memory_space<smem>>
    %58 = vector.broadcast %57 : f32 to vector<2x256xf32>
    %59 = arith.mulf %58, %52 : vector<2x256xf32>
    %60 = arith.addf %45, %59 : vector<2x256xf32>
    %c56 = arith.constant 56 : index
    %61 = memref.load %arg3[%c56] : memref<81xf32, #tpu.memory_space<smem>>
    %62 = vector.broadcast %61 : f32 to vector<2x256xf32>
    %63 = arith.mulf %62, %52 : vector<2x256xf32>
    %64 = arith.addf %49, %63 : vector<2x256xf32>
    %c1_i32 = arith.constant 1 : i32
    %65 = tpu.dynamic_rotate %9 by %c1_i32 dim 1 : vector<2x256xf32>, i32 -> vector<2x256xf32>
    %66 = vector.broadcast %3 : vector<1x256xf32> to vector<2x256xf32>
    %67 = arith.mulf %65, %66 : vector<2x256xf32>
    %c3_23 = arith.constant 3 : index
    %68 = memref.load %arg3[%c3_23] : memref<81xf32, #tpu.memory_space<smem>>
    %69 = vector.broadcast %68 : f32 to vector<2x256xf32>
    %70 = arith.mulf %69, %67 : vector<2x256xf32>
    %71 = arith.addf %56, %70 : vector<2x256xf32>
    %c30 = arith.constant 30 : index
    %72 = memref.load %arg3[%c30] : memref<81xf32, #tpu.memory_space<smem>>
    %73 = vector.broadcast %72 : f32 to vector<2x256xf32>
    %74 = arith.mulf %73, %67 : vector<2x256xf32>
    %75 = arith.addf %60, %74 : vector<2x256xf32>
    %c57 = arith.constant 57 : index
    %76 = memref.load %arg3[%c57] : memref<81xf32, #tpu.memory_space<smem>>
    %77 = vector.broadcast %76 : f32 to vector<2x256xf32>
    %78 = arith.mulf %77, %67 : vector<2x256xf32>
    %79 = arith.addf %64, %78 : vector<2x256xf32>
    %c4 = arith.constant 4 : index
    %80 = memref.load %arg3[%c4] : memref<81xf32, #tpu.memory_space<smem>>
    %81 = vector.broadcast %80 : f32 to vector<2x256xf32>
    %82 = arith.mulf %81, %9 : vector<2x256xf32>
    %83 = arith.addf %71, %82 : vector<2x256xf32>
    %c31 = arith.constant 31 : index
    %84 = memref.load %arg3[%c31] : memref<81xf32, #tpu.memory_space<smem>>
    %85 = vector.broadcast %84 : f32 to vector<2x256xf32>
    %86 = arith.mulf %85, %9 : vector<2x256xf32>
    %87 = arith.addf %75, %86 : vector<2x256xf32>
    %c58 = arith.constant 58 : index
    %88 = memref.load %arg3[%c58] : memref<81xf32, #tpu.memory_space<smem>>
    %89 = vector.broadcast %88 : f32 to vector<2x256xf32>
    %90 = arith.mulf %89, %9 : vector<2x256xf32>
    %91 = arith.addf %79, %90 : vector<2x256xf32>
    %c255_i32 = arith.constant 255 : i32
    %92 = tpu.dynamic_rotate %9 by %c255_i32 dim 1 : vector<2x256xf32>, i32 -> vector<2x256xf32>
    %93 = vector.broadcast %4 : vector<1x256xf32> to vector<2x256xf32>
    %94 = arith.mulf %92, %93 : vector<2x256xf32>
    %c5_24 = arith.constant 5 : index
    %95 = memref.load %arg3[%c5_24] : memref<81xf32, #tpu.memory_space<smem>>
    %96 = vector.broadcast %95 : f32 to vector<2x256xf32>
    %97 = arith.mulf %96, %94 : vector<2x256xf32>
    %98 = arith.addf %83, %97 : vector<2x256xf32>
    %c32 = arith.constant 32 : index
    %99 = memref.load %arg3[%c32] : memref<81xf32, #tpu.memory_space<smem>>
    %100 = vector.broadcast %99 : f32 to vector<2x256xf32>
    %101 = arith.mulf %100, %94 : vector<2x256xf32>
    %102 = arith.addf %87, %101 : vector<2x256xf32>
    %c59 = arith.constant 59 : index
    %103 = memref.load %arg3[%c59] : memref<81xf32, #tpu.memory_space<smem>>
    %104 = vector.broadcast %103 : f32 to vector<2x256xf32>
    %105 = arith.mulf %104, %94 : vector<2x256xf32>
    %106 = arith.addf %91, %105 : vector<2x256xf32>
    %c241_i32 = arith.constant 241 : i32
    %107 = tpu.dynamic_rotate %9 by %c241_i32 dim 1 : vector<2x256xf32>, i32 -> vector<2x256xf32>
    %108 = vector.broadcast %5 : vector<1x256xf32> to vector<2x256xf32>
    %109 = arith.mulf %107, %108 : vector<2x256xf32>
    %c6_25 = arith.constant 6 : index
    %110 = memref.load %arg3[%c6_25] : memref<81xf32, #tpu.memory_space<smem>>
    %111 = vector.broadcast %110 : f32 to vector<2x256xf32>
    %112 = arith.mulf %111, %109 : vector<2x256xf32>
    %113 = arith.addf %98, %112 : vector<2x256xf32>
    %c33 = arith.constant 33 : index
    %114 = memref.load %arg3[%c33] : memref<81xf32, #tpu.memory_space<smem>>
    %115 = vector.broadcast %114 : f32 to vector<2x256xf32>
    %116 = arith.mulf %115, %109 : vector<2x256xf32>
    %117 = arith.addf %102, %116 : vector<2x256xf32>
    %c60 = arith.constant 60 : index
    %118 = memref.load %arg3[%c60] : memref<81xf32, #tpu.memory_space<smem>>
    %119 = vector.broadcast %118 : f32 to vector<2x256xf32>
    %120 = arith.mulf %119, %109 : vector<2x256xf32>
    %121 = arith.addf %106, %120 : vector<2x256xf32>
    %c240_i32 = arith.constant 240 : i32
    %122 = tpu.dynamic_rotate %9 by %c240_i32 dim 1 : vector<2x256xf32>, i32 -> vector<2x256xf32>
    %123 = vector.broadcast %6 : vector<1x256xf32> to vector<2x256xf32>
    %124 = arith.mulf %122, %123 : vector<2x256xf32>
    %c7_26 = arith.constant 7 : index
    %125 = memref.load %arg3[%c7_26] : memref<81xf32, #tpu.memory_space<smem>>
    %126 = vector.broadcast %125 : f32 to vector<2x256xf32>
    %127 = arith.mulf %126, %124 : vector<2x256xf32>
    %128 = arith.addf %113, %127 : vector<2x256xf32>
    %c34 = arith.constant 34 : index
    %129 = memref.load %arg3[%c34] : memref<81xf32, #tpu.memory_space<smem>>
    %130 = vector.broadcast %129 : f32 to vector<2x256xf32>
    %131 = arith.mulf %130, %124 : vector<2x256xf32>
    %132 = arith.addf %117, %131 : vector<2x256xf32>
    %c61 = arith.constant 61 : index
    %133 = memref.load %arg3[%c61] : memref<81xf32, #tpu.memory_space<smem>>
    %134 = vector.broadcast %133 : f32 to vector<2x256xf32>
    %135 = arith.mulf %134, %124 : vector<2x256xf32>
    %136 = arith.addf %121, %135 : vector<2x256xf32>
    %c239_i32 = arith.constant 239 : i32
    %137 = tpu.dynamic_rotate %9 by %c239_i32 dim 1 : vector<2x256xf32>, i32 -> vector<2x256xf32>
    %138 = vector.broadcast %7 : vector<1x256xf32> to vector<2x256xf32>
    %139 = arith.mulf %137, %138 : vector<2x256xf32>
    %c8_27 = arith.constant 8 : index
    %140 = memref.load %arg3[%c8_27] : memref<81xf32, #tpu.memory_space<smem>>
    %141 = vector.broadcast %140 : f32 to vector<2x256xf32>
    %142 = arith.mulf %141, %139 : vector<2x256xf32>
    %143 = arith.addf %128, %142 : vector<2x256xf32>
    %c35 = arith.constant 35 : index
    %144 = memref.load %arg3[%c35] : memref<81xf32, #tpu.memory_space<smem>>
    %145 = vector.broadcast %144 : f32 to vector<2x256xf32>
    %146 = arith.mulf %145, %139 : vector<2x256xf32>
    %147 = arith.addf %132, %146 : vector<2x256xf32>
    %c62 = arith.constant 62 : index
    %148 = memref.load %arg3[%c62] : memref<81xf32, #tpu.memory_space<smem>>
    %149 = vector.broadcast %148 : f32 to vector<2x256xf32>
    %150 = arith.mulf %149, %139 : vector<2x256xf32>
    %151 = arith.addf %136, %150 : vector<2x256xf32>
    %c17_i32_28 = arith.constant 17 : i32
    %152 = tpu.dynamic_rotate %11 by %c17_i32_28 dim 1 : vector<2x256xf32>, i32 -> vector<2x256xf32>
    %153 = vector.broadcast %0 : vector<1x256xf32> to vector<2x256xf32>
    %154 = arith.mulf %152, %153 : vector<2x256xf32>
    %c9 = arith.constant 9 : index
    %155 = memref.load %arg3[%c9] : memref<81xf32, #tpu.memory_space<smem>>
    %156 = vector.broadcast %155 : f32 to vector<2x256xf32>
    %157 = arith.mulf %156, %154 : vector<2x256xf32>
    %158 = arith.addf %143, %157 : vector<2x256xf32>
    %c36 = arith.constant 36 : index
    %159 = memref.load %arg3[%c36] : memref<81xf32, #tpu.memory_space<smem>>
    %160 = vector.broadcast %159 : f32 to vector<2x256xf32>
    %161 = arith.mulf %160, %154 : vector<2x256xf32>
    %162 = arith.addf %147, %161 : vector<2x256xf32>
    %c63 = arith.constant 63 : index
    %163 = memref.load %arg3[%c63] : memref<81xf32, #tpu.memory_space<smem>>
    %164 = vector.broadcast %163 : f32 to vector<2x256xf32>
    %165 = arith.mulf %164, %154 : vector<2x256xf32>
    %166 = arith.addf %151, %165 : vector<2x256xf32>
    %c16_i32_29 = arith.constant 16 : i32
    %167 = tpu.dynamic_rotate %11 by %c16_i32_29 dim 1 : vector<2x256xf32>, i32 -> vector<2x256xf32>
    %168 = vector.broadcast %1 : vector<1x256xf32> to vector<2x256xf32>
    %169 = arith.mulf %167, %168 : vector<2x256xf32>
    %c10 = arith.constant 10 : index
    %170 = memref.load %arg3[%c10] : memref<81xf32, #tpu.memory_space<smem>>
    %171 = vector.broadcast %170 : f32 to vector<2x256xf32>
    %172 = arith.mulf %171, %169 : vector<2x256xf32>
    %173 = arith.addf %158, %172 : vector<2x256xf32>
    %c37 = arith.constant 37 : index
    %174 = memref.load %arg3[%c37] : memref<81xf32, #tpu.memory_space<smem>>
    %175 = vector.broadcast %174 : f32 to vector<2x256xf32>
    %176 = arith.mulf %175, %169 : vector<2x256xf32>
    %177 = arith.addf %162, %176 : vector<2x256xf32>
    %c64 = arith.constant 64 : index
    %178 = memref.load %arg3[%c64] : memref<81xf32, #tpu.memory_space<smem>>
    %179 = vector.broadcast %178 : f32 to vector<2x256xf32>
    %180 = arith.mulf %179, %169 : vector<2x256xf32>
    %181 = arith.addf %166, %180 : vector<2x256xf32>
    %c15_i32_30 = arith.constant 15 : i32
    %182 = tpu.dynamic_rotate %11 by %c15_i32_30 dim 1 : vector<2x256xf32>, i32 -> vector<2x256xf32>
    %183 = vector.broadcast %2 : vector<1x256xf32> to vector<2x256xf32>
    %184 = arith.mulf %182, %183 : vector<2x256xf32>
    %c11 = arith.constant 11 : index
    %185 = memref.load %arg3[%c11] : memref<81xf32, #tpu.memory_space<smem>>
    %186 = vector.broadcast %185 : f32 to vector<2x256xf32>
    %187 = arith.mulf %186, %184 : vector<2x256xf32>
    %188 = arith.addf %173, %187 : vector<2x256xf32>
    %c38 = arith.constant 38 : index
    %189 = memref.load %arg3[%c38] : memref<81xf32, #tpu.memory_space<smem>>
    %190 = vector.broadcast %189 : f32 to vector<2x256xf32>
    %191 = arith.mulf %190, %184 : vector<2x256xf32>
    %192 = arith.addf %177, %191 : vector<2x256xf32>
    %c65 = arith.constant 65 : index
    %193 = memref.load %arg3[%c65] : memref<81xf32, #tpu.memory_space<smem>>
    %194 = vector.broadcast %193 : f32 to vector<2x256xf32>
    %195 = arith.mulf %194, %184 : vector<2x256xf32>
    %196 = arith.addf %181, %195 : vector<2x256xf32>
    %c1_i32_31 = arith.constant 1 : i32
    %197 = tpu.dynamic_rotate %11 by %c1_i32_31 dim 1 : vector<2x256xf32>, i32 -> vector<2x256xf32>
    %198 = vector.broadcast %3 : vector<1x256xf32> to vector<2x256xf32>
    %199 = arith.mulf %197, %198 : vector<2x256xf32>
    %c12 = arith.constant 12 : index
    %200 = memref.load %arg3[%c12] : memref<81xf32, #tpu.memory_space<smem>>
    %201 = vector.broadcast %200 : f32 to vector<2x256xf32>
    %202 = arith.mulf %201, %199 : vector<2x256xf32>
    %203 = arith.addf %188, %202 : vector<2x256xf32>
    %c39 = arith.constant 39 : index
    %204 = memref.load %arg3[%c39] : memref<81xf32, #tpu.memory_space<smem>>
    %205 = vector.broadcast %204 : f32 to vector<2x256xf32>
    %206 = arith.mulf %205, %199 : vector<2x256xf32>
    %207 = arith.addf %192, %206 : vector<2x256xf32>
    %c66 = arith.constant 66 : index
    %208 = memref.load %arg3[%c66] : memref<81xf32, #tpu.memory_space<smem>>
    %209 = vector.broadcast %208 : f32 to vector<2x256xf32>
    %210 = arith.mulf %209, %199 : vector<2x256xf32>
    %211 = arith.addf %196, %210 : vector<2x256xf32>
    %c13 = arith.constant 13 : index
    %212 = memref.load %arg3[%c13] : memref<81xf32, #tpu.memory_space<smem>>
    %213 = vector.broadcast %212 : f32 to vector<2x256xf32>
    %214 = arith.mulf %213, %11 : vector<2x256xf32>
    %215 = arith.addf %203, %214 : vector<2x256xf32>
    %c40 = arith.constant 40 : index
    %216 = memref.load %arg3[%c40] : memref<81xf32, #tpu.memory_space<smem>>
    %217 = vector.broadcast %216 : f32 to vector<2x256xf32>
    %218 = arith.mulf %217, %11 : vector<2x256xf32>
    %219 = arith.addf %207, %218 : vector<2x256xf32>
    %c67 = arith.constant 67 : index
    %220 = memref.load %arg3[%c67] : memref<81xf32, #tpu.memory_space<smem>>
    %221 = vector.broadcast %220 : f32 to vector<2x256xf32>
    %222 = arith.mulf %221, %11 : vector<2x256xf32>
    %223 = arith.addf %211, %222 : vector<2x256xf32>
    %c255_i32_32 = arith.constant 255 : i32
    %224 = tpu.dynamic_rotate %11 by %c255_i32_32 dim 1 : vector<2x256xf32>, i32 -> vector<2x256xf32>
    %225 = vector.broadcast %4 : vector<1x256xf32> to vector<2x256xf32>
    %226 = arith.mulf %224, %225 : vector<2x256xf32>
    %c14 = arith.constant 14 : index
    %227 = memref.load %arg3[%c14] : memref<81xf32, #tpu.memory_space<smem>>
    %228 = vector.broadcast %227 : f32 to vector<2x256xf32>
    %229 = arith.mulf %228, %226 : vector<2x256xf32>
    %230 = arith.addf %215, %229 : vector<2x256xf32>
    %c41 = arith.constant 41 : index
    %231 = memref.load %arg3[%c41] : memref<81xf32, #tpu.memory_space<smem>>
    %232 = vector.broadcast %231 : f32 to vector<2x256xf32>
    %233 = arith.mulf %232, %226 : vector<2x256xf32>
    %234 = arith.addf %219, %233 : vector<2x256xf32>
    %c68 = arith.constant 68 : index
    %235 = memref.load %arg3[%c68] : memref<81xf32, #tpu.memory_space<smem>>
    %236 = vector.broadcast %235 : f32 to vector<2x256xf32>
    %237 = arith.mulf %236, %226 : vector<2x256xf32>
    %238 = arith.addf %223, %237 : vector<2x256xf32>
    %c241_i32_33 = arith.constant 241 : i32
    %239 = tpu.dynamic_rotate %11 by %c241_i32_33 dim 1 : vector<2x256xf32>, i32 -> vector<2x256xf32>
    %240 = vector.broadcast %5 : vector<1x256xf32> to vector<2x256xf32>
    %241 = arith.mulf %239, %240 : vector<2x256xf32>
    %c15 = arith.constant 15 : index
    %242 = memref.load %arg3[%c15] : memref<81xf32, #tpu.memory_space<smem>>
    %243 = vector.broadcast %242 : f32 to vector<2x256xf32>
    %244 = arith.mulf %243, %241 : vector<2x256xf32>
    %245 = arith.addf %230, %244 : vector<2x256xf32>
    %c42 = arith.constant 42 : index
    %246 = memref.load %arg3[%c42] : memref<81xf32, #tpu.memory_space<smem>>
    %247 = vector.broadcast %246 : f32 to vector<2x256xf32>
    %248 = arith.mulf %247, %241 : vector<2x256xf32>
    %249 = arith.addf %234, %248 : vector<2x256xf32>
    %c69 = arith.constant 69 : index
    %250 = memref.load %arg3[%c69] : memref<81xf32, #tpu.memory_space<smem>>
    %251 = vector.broadcast %250 : f32 to vector<2x256xf32>
    %252 = arith.mulf %251, %241 : vector<2x256xf32>
    %253 = arith.addf %238, %252 : vector<2x256xf32>
    %c240_i32_34 = arith.constant 240 : i32
    %254 = tpu.dynamic_rotate %11 by %c240_i32_34 dim 1 : vector<2x256xf32>, i32 -> vector<2x256xf32>
    %255 = vector.broadcast %6 : vector<1x256xf32> to vector<2x256xf32>
    %256 = arith.mulf %254, %255 : vector<2x256xf32>
    %c16 = arith.constant 16 : index
    %257 = memref.load %arg3[%c16] : memref<81xf32, #tpu.memory_space<smem>>
    %258 = vector.broadcast %257 : f32 to vector<2x256xf32>
    %259 = arith.mulf %258, %256 : vector<2x256xf32>
    %260 = arith.addf %245, %259 : vector<2x256xf32>
    %c43 = arith.constant 43 : index
    %261 = memref.load %arg3[%c43] : memref<81xf32, #tpu.memory_space<smem>>
    %262 = vector.broadcast %261 : f32 to vector<2x256xf32>
    %263 = arith.mulf %262, %256 : vector<2x256xf32>
    %264 = arith.addf %249, %263 : vector<2x256xf32>
    %c70 = arith.constant 70 : index
    %265 = memref.load %arg3[%c70] : memref<81xf32, #tpu.memory_space<smem>>
    %266 = vector.broadcast %265 : f32 to vector<2x256xf32>
    %267 = arith.mulf %266, %256 : vector<2x256xf32>
    %268 = arith.addf %253, %267 : vector<2x256xf32>
    %c239_i32_35 = arith.constant 239 : i32
    %269 = tpu.dynamic_rotate %11 by %c239_i32_35 dim 1 : vector<2x256xf32>, i32 -> vector<2x256xf32>
    %270 = vector.broadcast %7 : vector<1x256xf32> to vector<2x256xf32>
    %271 = arith.mulf %269, %270 : vector<2x256xf32>
    %c17 = arith.constant 17 : index
    %272 = memref.load %arg3[%c17] : memref<81xf32, #tpu.memory_space<smem>>
    %273 = vector.broadcast %272 : f32 to vector<2x256xf32>
    %274 = arith.mulf %273, %271 : vector<2x256xf32>
    %275 = arith.addf %260, %274 : vector<2x256xf32>
    %c44 = arith.constant 44 : index
    %276 = memref.load %arg3[%c44] : memref<81xf32, #tpu.memory_space<smem>>
    %277 = vector.broadcast %276 : f32 to vector<2x256xf32>
    %278 = arith.mulf %277, %271 : vector<2x256xf32>
    %279 = arith.addf %264, %278 : vector<2x256xf32>
    %c71 = arith.constant 71 : index
    %280 = memref.load %arg3[%c71] : memref<81xf32, #tpu.memory_space<smem>>
    %281 = vector.broadcast %280 : f32 to vector<2x256xf32>
    %282 = arith.mulf %281, %271 : vector<2x256xf32>
    %283 = arith.addf %268, %282 : vector<2x256xf32>
    %c17_i32_36 = arith.constant 17 : i32
    %284 = tpu.dynamic_rotate %13 by %c17_i32_36 dim 1 : vector<2x256xf32>, i32 -> vector<2x256xf32>
    %285 = vector.broadcast %0 : vector<1x256xf32> to vector<2x256xf32>
    %286 = arith.mulf %284, %285 : vector<2x256xf32>
    %c18 = arith.constant 18 : index
    %287 = memref.load %arg3[%c18] : memref<81xf32, #tpu.memory_space<smem>>
    %288 = vector.broadcast %287 : f32 to vector<2x256xf32>
    %289 = arith.mulf %288, %286 : vector<2x256xf32>
    %290 = arith.addf %275, %289 : vector<2x256xf32>
    %c45 = arith.constant 45 : index
    %291 = memref.load %arg3[%c45] : memref<81xf32, #tpu.memory_space<smem>>
    %292 = vector.broadcast %291 : f32 to vector<2x256xf32>
    %293 = arith.mulf %292, %286 : vector<2x256xf32>
    %294 = arith.addf %279, %293 : vector<2x256xf32>
    %c72 = arith.constant 72 : index
    %295 = memref.load %arg3[%c72] : memref<81xf32, #tpu.memory_space<smem>>
    %296 = vector.broadcast %295 : f32 to vector<2x256xf32>
    %297 = arith.mulf %296, %286 : vector<2x256xf32>
    %298 = arith.addf %283, %297 : vector<2x256xf32>
    %c16_i32_37 = arith.constant 16 : i32
    %299 = tpu.dynamic_rotate %13 by %c16_i32_37 dim 1 : vector<2x256xf32>, i32 -> vector<2x256xf32>
    %300 = vector.broadcast %1 : vector<1x256xf32> to vector<2x256xf32>
    %301 = arith.mulf %299, %300 : vector<2x256xf32>
    %c19 = arith.constant 19 : index
    %302 = memref.load %arg3[%c19] : memref<81xf32, #tpu.memory_space<smem>>
    %303 = vector.broadcast %302 : f32 to vector<2x256xf32>
    %304 = arith.mulf %303, %301 : vector<2x256xf32>
    %305 = arith.addf %290, %304 : vector<2x256xf32>
    %c46 = arith.constant 46 : index
    %306 = memref.load %arg3[%c46] : memref<81xf32, #tpu.memory_space<smem>>
    %307 = vector.broadcast %306 : f32 to vector<2x256xf32>
    %308 = arith.mulf %307, %301 : vector<2x256xf32>
    %309 = arith.addf %294, %308 : vector<2x256xf32>
    %c73 = arith.constant 73 : index
    %310 = memref.load %arg3[%c73] : memref<81xf32, #tpu.memory_space<smem>>
    %311 = vector.broadcast %310 : f32 to vector<2x256xf32>
    %312 = arith.mulf %311, %301 : vector<2x256xf32>
    %313 = arith.addf %298, %312 : vector<2x256xf32>
    %c15_i32_38 = arith.constant 15 : i32
    %314 = tpu.dynamic_rotate %13 by %c15_i32_38 dim 1 : vector<2x256xf32>, i32 -> vector<2x256xf32>
    %315 = vector.broadcast %2 : vector<1x256xf32> to vector<2x256xf32>
    %316 = arith.mulf %314, %315 : vector<2x256xf32>
    %c20 = arith.constant 20 : index
    %317 = memref.load %arg3[%c20] : memref<81xf32, #tpu.memory_space<smem>>
    %318 = vector.broadcast %317 : f32 to vector<2x256xf32>
    %319 = arith.mulf %318, %316 : vector<2x256xf32>
    %320 = arith.addf %305, %319 : vector<2x256xf32>
    %c47 = arith.constant 47 : index
    %321 = memref.load %arg3[%c47] : memref<81xf32, #tpu.memory_space<smem>>
    %322 = vector.broadcast %321 : f32 to vector<2x256xf32>
    %323 = arith.mulf %322, %316 : vector<2x256xf32>
    %324 = arith.addf %309, %323 : vector<2x256xf32>
    %c74 = arith.constant 74 : index
    %325 = memref.load %arg3[%c74] : memref<81xf32, #tpu.memory_space<smem>>
    %326 = vector.broadcast %325 : f32 to vector<2x256xf32>
    %327 = arith.mulf %326, %316 : vector<2x256xf32>
    %328 = arith.addf %313, %327 : vector<2x256xf32>
    %c1_i32_39 = arith.constant 1 : i32
    %329 = tpu.dynamic_rotate %13 by %c1_i32_39 dim 1 : vector<2x256xf32>, i32 -> vector<2x256xf32>
    %330 = vector.broadcast %3 : vector<1x256xf32> to vector<2x256xf32>
    %331 = arith.mulf %329, %330 : vector<2x256xf32>
    %c21 = arith.constant 21 : index
    %332 = memref.load %arg3[%c21] : memref<81xf32, #tpu.memory_space<smem>>
    %333 = vector.broadcast %332 : f32 to vector<2x256xf32>
    %334 = arith.mulf %333, %331 : vector<2x256xf32>
    %335 = arith.addf %320, %334 : vector<2x256xf32>
    %c48 = arith.constant 48 : index
    %336 = memref.load %arg3[%c48] : memref<81xf32, #tpu.memory_space<smem>>
    %337 = vector.broadcast %336 : f32 to vector<2x256xf32>
    %338 = arith.mulf %337, %331 : vector<2x256xf32>
    %339 = arith.addf %324, %338 : vector<2x256xf32>
    %c75 = arith.constant 75 : index
    %340 = memref.load %arg3[%c75] : memref<81xf32, #tpu.memory_space<smem>>
    %341 = vector.broadcast %340 : f32 to vector<2x256xf32>
    %342 = arith.mulf %341, %331 : vector<2x256xf32>
    %343 = arith.addf %328, %342 : vector<2x256xf32>
    %c22 = arith.constant 22 : index
    %344 = memref.load %arg3[%c22] : memref<81xf32, #tpu.memory_space<smem>>
    %345 = vector.broadcast %344 : f32 to vector<2x256xf32>
    %346 = arith.mulf %345, %13 : vector<2x256xf32>
    %347 = arith.addf %335, %346 : vector<2x256xf32>
    %c49 = arith.constant 49 : index
    %348 = memref.load %arg3[%c49] : memref<81xf32, #tpu.memory_space<smem>>
    %349 = vector.broadcast %348 : f32 to vector<2x256xf32>
    %350 = arith.mulf %349, %13 : vector<2x256xf32>
    %351 = arith.addf %339, %350 : vector<2x256xf32>
    %c76 = arith.constant 76 : index
    %352 = memref.load %arg3[%c76] : memref<81xf32, #tpu.memory_space<smem>>
    %353 = vector.broadcast %352 : f32 to vector<2x256xf32>
    %354 = arith.mulf %353, %13 : vector<2x256xf32>
    %355 = arith.addf %343, %354 : vector<2x256xf32>
    %c255_i32_40 = arith.constant 255 : i32
    %356 = tpu.dynamic_rotate %13 by %c255_i32_40 dim 1 : vector<2x256xf32>, i32 -> vector<2x256xf32>
    %357 = vector.broadcast %4 : vector<1x256xf32> to vector<2x256xf32>
    %358 = arith.mulf %356, %357 : vector<2x256xf32>
    %c23 = arith.constant 23 : index
    %359 = memref.load %arg3[%c23] : memref<81xf32, #tpu.memory_space<smem>>
    %360 = vector.broadcast %359 : f32 to vector<2x256xf32>
    %361 = arith.mulf %360, %358 : vector<2x256xf32>
    %362 = arith.addf %347, %361 : vector<2x256xf32>
    %c50 = arith.constant 50 : index
    %363 = memref.load %arg3[%c50] : memref<81xf32, #tpu.memory_space<smem>>
    %364 = vector.broadcast %363 : f32 to vector<2x256xf32>
    %365 = arith.mulf %364, %358 : vector<2x256xf32>
    %366 = arith.addf %351, %365 : vector<2x256xf32>
    %c77 = arith.constant 77 : index
    %367 = memref.load %arg3[%c77] : memref<81xf32, #tpu.memory_space<smem>>
    %368 = vector.broadcast %367 : f32 to vector<2x256xf32>
    %369 = arith.mulf %368, %358 : vector<2x256xf32>
    %370 = arith.addf %355, %369 : vector<2x256xf32>
    %c241_i32_41 = arith.constant 241 : i32
    %371 = tpu.dynamic_rotate %13 by %c241_i32_41 dim 1 : vector<2x256xf32>, i32 -> vector<2x256xf32>
    %372 = vector.broadcast %5 : vector<1x256xf32> to vector<2x256xf32>
    %373 = arith.mulf %371, %372 : vector<2x256xf32>
    %c24 = arith.constant 24 : index
    %374 = memref.load %arg3[%c24] : memref<81xf32, #tpu.memory_space<smem>>
    %375 = vector.broadcast %374 : f32 to vector<2x256xf32>
    %376 = arith.mulf %375, %373 : vector<2x256xf32>
    %377 = arith.addf %362, %376 : vector<2x256xf32>
    %c51 = arith.constant 51 : index
    %378 = memref.load %arg3[%c51] : memref<81xf32, #tpu.memory_space<smem>>
    %379 = vector.broadcast %378 : f32 to vector<2x256xf32>
    %380 = arith.mulf %379, %373 : vector<2x256xf32>
    %381 = arith.addf %366, %380 : vector<2x256xf32>
    %c78 = arith.constant 78 : index
    %382 = memref.load %arg3[%c78] : memref<81xf32, #tpu.memory_space<smem>>
    %383 = vector.broadcast %382 : f32 to vector<2x256xf32>
    %384 = arith.mulf %383, %373 : vector<2x256xf32>
    %385 = arith.addf %370, %384 : vector<2x256xf32>
    %c240_i32_42 = arith.constant 240 : i32
    %386 = tpu.dynamic_rotate %13 by %c240_i32_42 dim 1 : vector<2x256xf32>, i32 -> vector<2x256xf32>
    %387 = vector.broadcast %6 : vector<1x256xf32> to vector<2x256xf32>
    %388 = arith.mulf %386, %387 : vector<2x256xf32>
    %c25 = arith.constant 25 : index
    %389 = memref.load %arg3[%c25] : memref<81xf32, #tpu.memory_space<smem>>
    %390 = vector.broadcast %389 : f32 to vector<2x256xf32>
    %391 = arith.mulf %390, %388 : vector<2x256xf32>
    %392 = arith.addf %377, %391 : vector<2x256xf32>
    %c52 = arith.constant 52 : index
    %393 = memref.load %arg3[%c52] : memref<81xf32, #tpu.memory_space<smem>>
    %394 = vector.broadcast %393 : f32 to vector<2x256xf32>
    %395 = arith.mulf %394, %388 : vector<2x256xf32>
    %396 = arith.addf %381, %395 : vector<2x256xf32>
    %c79 = arith.constant 79 : index
    %397 = memref.load %arg3[%c79] : memref<81xf32, #tpu.memory_space<smem>>
    %398 = vector.broadcast %397 : f32 to vector<2x256xf32>
    %399 = arith.mulf %398, %388 : vector<2x256xf32>
    %400 = arith.addf %385, %399 : vector<2x256xf32>
    %c239_i32_43 = arith.constant 239 : i32
    %401 = tpu.dynamic_rotate %13 by %c239_i32_43 dim 1 : vector<2x256xf32>, i32 -> vector<2x256xf32>
    %402 = vector.broadcast %7 : vector<1x256xf32> to vector<2x256xf32>
    %403 = arith.mulf %401, %402 : vector<2x256xf32>
    %c26 = arith.constant 26 : index
    %404 = memref.load %arg3[%c26] : memref<81xf32, #tpu.memory_space<smem>>
    %405 = vector.broadcast %404 : f32 to vector<2x256xf32>
    %406 = arith.mulf %405, %403 : vector<2x256xf32>
    %407 = arith.addf %392, %406 : vector<2x256xf32>
    %c53 = arith.constant 53 : index
    %408 = memref.load %arg3[%c53] : memref<81xf32, #tpu.memory_space<smem>>
    %409 = vector.broadcast %408 : f32 to vector<2x256xf32>
    %410 = arith.mulf %409, %403 : vector<2x256xf32>
    %411 = arith.addf %396, %410 : vector<2x256xf32>
    %c80 = arith.constant 80 : index
    %412 = memref.load %arg3[%c80] : memref<81xf32, #tpu.memory_space<smem>>
    %413 = vector.broadcast %412 : f32 to vector<2x256xf32>
    %414 = arith.mulf %413, %403 : vector<2x256xf32>
    %415 = arith.addf %400, %414 : vector<2x256xf32>
    %cst = arith.constant 0.000000e+00 : f32
    %416 = vector.broadcast %cst : f32 to vector<2x256xf32>
    %417 = arith.maximumf %407, %416 : vector<2x256xf32>
    %cst_44 = arith.constant 0.000000e+00 : f32
    %418 = vector.broadcast %cst_44 : f32 to vector<2x256xf32>
    %419 = arith.maximumf %411, %418 : vector<2x256xf32>
    %cst_45 = arith.constant 0.000000e+00 : f32
    %420 = vector.broadcast %cst_45 : f32 to vector<2x256xf32>
    %421 = arith.maximumf %415, %420 : vector<2x256xf32>
    %c0_46 = arith.constant 0 : index
    %422 = memref.load %arg6[%c0_46] : memref<3xf32, #tpu.memory_space<smem>>
    %423 = vector.broadcast %422 : f32 to vector<2x256xf32>
    %c1_47 = arith.constant 1 : index
    %424 = memref.load %arg6[%c1_47] : memref<3xf32, #tpu.memory_space<smem>>
    %425 = vector.broadcast %424 : f32 to vector<2x256xf32>
    %c2_48 = arith.constant 2 : index
    %426 = memref.load %arg6[%c2_48] : memref<3xf32, #tpu.memory_space<smem>>
    %427 = vector.broadcast %426 : f32 to vector<2x256xf32>
    %c17_i32_49 = arith.constant 17 : i32
    %428 = tpu.dynamic_rotate %417 by %c17_i32_49 dim 1 : vector<2x256xf32>, i32 -> vector<2x256xf32>
    %429 = vector.broadcast %0 : vector<1x256xf32> to vector<2x256xf32>
    %430 = arith.mulf %428, %429 : vector<2x256xf32>
    %c0_50 = arith.constant 0 : index
    %431 = memref.load %arg5[%c0_50] : memref<81xf32, #tpu.memory_space<smem>>
    %432 = vector.broadcast %431 : f32 to vector<2x256xf32>
    %433 = arith.mulf %432, %430 : vector<2x256xf32>
    %434 = arith.addf %423, %433 : vector<2x256xf32>
    %c27_51 = arith.constant 27 : index
    %435 = memref.load %arg5[%c27_51] : memref<81xf32, #tpu.memory_space<smem>>
    %436 = vector.broadcast %435 : f32 to vector<2x256xf32>
    %437 = arith.mulf %436, %430 : vector<2x256xf32>
    %438 = arith.addf %425, %437 : vector<2x256xf32>
    %c54_52 = arith.constant 54 : index
    %439 = memref.load %arg5[%c54_52] : memref<81xf32, #tpu.memory_space<smem>>
    %440 = vector.broadcast %439 : f32 to vector<2x256xf32>
    %441 = arith.mulf %440, %430 : vector<2x256xf32>
    %442 = arith.addf %427, %441 : vector<2x256xf32>
    %c16_i32_53 = arith.constant 16 : i32
    %443 = tpu.dynamic_rotate %417 by %c16_i32_53 dim 1 : vector<2x256xf32>, i32 -> vector<2x256xf32>
    %444 = vector.broadcast %1 : vector<1x256xf32> to vector<2x256xf32>
    %445 = arith.mulf %443, %444 : vector<2x256xf32>
    %c1_54 = arith.constant 1 : index
    %446 = memref.load %arg5[%c1_54] : memref<81xf32, #tpu.memory_space<smem>>
    %447 = vector.broadcast %446 : f32 to vector<2x256xf32>
    %448 = arith.mulf %447, %445 : vector<2x256xf32>
    %449 = arith.addf %434, %448 : vector<2x256xf32>
    %c28_55 = arith.constant 28 : index
    %450 = memref.load %arg5[%c28_55] : memref<81xf32, #tpu.memory_space<smem>>
    %451 = vector.broadcast %450 : f32 to vector<2x256xf32>
    %452 = arith.mulf %451, %445 : vector<2x256xf32>
    %453 = arith.addf %438, %452 : vector<2x256xf32>
    %c55_56 = arith.constant 55 : index
    %454 = memref.load %arg5[%c55_56] : memref<81xf32, #tpu.memory_space<smem>>
    %455 = vector.broadcast %454 : f32 to vector<2x256xf32>
    %456 = arith.mulf %455, %445 : vector<2x256xf32>
    %457 = arith.addf %442, %456 : vector<2x256xf32>
    %c15_i32_57 = arith.constant 15 : i32
    %458 = tpu.dynamic_rotate %417 by %c15_i32_57 dim 1 : vector<2x256xf32>, i32 -> vector<2x256xf32>
    %459 = vector.broadcast %2 : vector<1x256xf32> to vector<2x256xf32>
    %460 = arith.mulf %458, %459 : vector<2x256xf32>
    %c2_58 = arith.constant 2 : index
    %461 = memref.load %arg5[%c2_58] : memref<81xf32, #tpu.memory_space<smem>>
    %462 = vector.broadcast %461 : f32 to vector<2x256xf32>
    %463 = arith.mulf %462, %460 : vector<2x256xf32>
    %464 = arith.addf %449, %463 : vector<2x256xf32>
    %c29_59 = arith.constant 29 : index
    %465 = memref.load %arg5[%c29_59] : memref<81xf32, #tpu.memory_space<smem>>
    %466 = vector.broadcast %465 : f32 to vector<2x256xf32>
    %467 = arith.mulf %466, %460 : vector<2x256xf32>
    %468 = arith.addf %453, %467 : vector<2x256xf32>
    %c56_60 = arith.constant 56 : index
    %469 = memref.load %arg5[%c56_60] : memref<81xf32, #tpu.memory_space<smem>>
    %470 = vector.broadcast %469 : f32 to vector<2x256xf32>
    %471 = arith.mulf %470, %460 : vector<2x256xf32>
    %472 = arith.addf %457, %471 : vector<2x256xf32>
    %c1_i32_61 = arith.constant 1 : i32
    %473 = tpu.dynamic_rotate %417 by %c1_i32_61 dim 1 : vector<2x256xf32>, i32 -> vector<2x256xf32>
    %474 = vector.broadcast %3 : vector<1x256xf32> to vector<2x256xf32>
    %475 = arith.mulf %473, %474 : vector<2x256xf32>
    %c3_62 = arith.constant 3 : index
    %476 = memref.load %arg5[%c3_62] : memref<81xf32, #tpu.memory_space<smem>>
    %477 = vector.broadcast %476 : f32 to vector<2x256xf32>
    %478 = arith.mulf %477, %475 : vector<2x256xf32>
    %479 = arith.addf %464, %478 : vector<2x256xf32>
    %c30_63 = arith.constant 30 : index
    %480 = memref.load %arg5[%c30_63] : memref<81xf32, #tpu.memory_space<smem>>
    %481 = vector.broadcast %480 : f32 to vector<2x256xf32>
    %482 = arith.mulf %481, %475 : vector<2x256xf32>
    %483 = arith.addf %468, %482 : vector<2x256xf32>
    %c57_64 = arith.constant 57 : index
    %484 = memref.load %arg5[%c57_64] : memref<81xf32, #tpu.memory_space<smem>>
    %485 = vector.broadcast %484 : f32 to vector<2x256xf32>
    %486 = arith.mulf %485, %475 : vector<2x256xf32>
    %487 = arith.addf %472, %486 : vector<2x256xf32>
    %c4_65 = arith.constant 4 : index
    %488 = memref.load %arg5[%c4_65] : memref<81xf32, #tpu.memory_space<smem>>
    %489 = vector.broadcast %488 : f32 to vector<2x256xf32>
    %490 = arith.mulf %489, %417 : vector<2x256xf32>
    %491 = arith.addf %479, %490 : vector<2x256xf32>
    %c31_66 = arith.constant 31 : index
    %492 = memref.load %arg5[%c31_66] : memref<81xf32, #tpu.memory_space<smem>>
    %493 = vector.broadcast %492 : f32 to vector<2x256xf32>
    %494 = arith.mulf %493, %417 : vector<2x256xf32>
    %495 = arith.addf %483, %494 : vector<2x256xf32>
    %c58_67 = arith.constant 58 : index
    %496 = memref.load %arg5[%c58_67] : memref<81xf32, #tpu.memory_space<smem>>
    %497 = vector.broadcast %496 : f32 to vector<2x256xf32>
    %498 = arith.mulf %497, %417 : vector<2x256xf32>
    %499 = arith.addf %487, %498 : vector<2x256xf32>
    %c255_i32_68 = arith.constant 255 : i32
    %500 = tpu.dynamic_rotate %417 by %c255_i32_68 dim 1 : vector<2x256xf32>, i32 -> vector<2x256xf32>
    %501 = vector.broadcast %4 : vector<1x256xf32> to vector<2x256xf32>
    %502 = arith.mulf %500, %501 : vector<2x256xf32>
    %c5_69 = arith.constant 5 : index
    %503 = memref.load %arg5[%c5_69] : memref<81xf32, #tpu.memory_space<smem>>
    %504 = vector.broadcast %503 : f32 to vector<2x256xf32>
    %505 = arith.mulf %504, %502 : vector<2x256xf32>
    %506 = arith.addf %491, %505 : vector<2x256xf32>
    %c32_70 = arith.constant 32 : index
    %507 = memref.load %arg5[%c32_70] : memref<81xf32, #tpu.memory_space<smem>>
    %508 = vector.broadcast %507 : f32 to vector<2x256xf32>
    %509 = arith.mulf %508, %502 : vector<2x256xf32>
    %510 = arith.addf %495, %509 : vector<2x256xf32>
    %c59_71 = arith.constant 59 : index
    %511 = memref.load %arg5[%c59_71] : memref<81xf32, #tpu.memory_space<smem>>
    %512 = vector.broadcast %511 : f32 to vector<2x256xf32>
    %513 = arith.mulf %512, %502 : vector<2x256xf32>
    %514 = arith.addf %499, %513 : vector<2x256xf32>
    %c241_i32_72 = arith.constant 241 : i32
    %515 = tpu.dynamic_rotate %417 by %c241_i32_72 dim 1 : vector<2x256xf32>, i32 -> vector<2x256xf32>
    %516 = vector.broadcast %5 : vector<1x256xf32> to vector<2x256xf32>
    %517 = arith.mulf %515, %516 : vector<2x256xf32>
    %c6_73 = arith.constant 6 : index
    %518 = memref.load %arg5[%c6_73] : memref<81xf32, #tpu.memory_space<smem>>
    %519 = vector.broadcast %518 : f32 to vector<2x256xf32>
    %520 = arith.mulf %519, %517 : vector<2x256xf32>
    %521 = arith.addf %506, %520 : vector<2x256xf32>
    %c33_74 = arith.constant 33 : index
    %522 = memref.load %arg5[%c33_74] : memref<81xf32, #tpu.memory_space<smem>>
    %523 = vector.broadcast %522 : f32 to vector<2x256xf32>
    %524 = arith.mulf %523, %517 : vector<2x256xf32>
    %525 = arith.addf %510, %524 : vector<2x256xf32>
    %c60_75 = arith.constant 60 : index
    %526 = memref.load %arg5[%c60_75] : memref<81xf32, #tpu.memory_space<smem>>
    %527 = vector.broadcast %526 : f32 to vector<2x256xf32>
    %528 = arith.mulf %527, %517 : vector<2x256xf32>
    %529 = arith.addf %514, %528 : vector<2x256xf32>
    %c240_i32_76 = arith.constant 240 : i32
    %530 = tpu.dynamic_rotate %417 by %c240_i32_76 dim 1 : vector<2x256xf32>, i32 -> vector<2x256xf32>
    %531 = vector.broadcast %6 : vector<1x256xf32> to vector<2x256xf32>
    %532 = arith.mulf %530, %531 : vector<2x256xf32>
    %c7_77 = arith.constant 7 : index
    %533 = memref.load %arg5[%c7_77] : memref<81xf32, #tpu.memory_space<smem>>
    %534 = vector.broadcast %533 : f32 to vector<2x256xf32>
    %535 = arith.mulf %534, %532 : vector<2x256xf32>
    %536 = arith.addf %521, %535 : vector<2x256xf32>
    %c34_78 = arith.constant 34 : index
    %537 = memref.load %arg5[%c34_78] : memref<81xf32, #tpu.memory_space<smem>>
    %538 = vector.broadcast %537 : f32 to vector<2x256xf32>
    %539 = arith.mulf %538, %532 : vector<2x256xf32>
    %540 = arith.addf %525, %539 : vector<2x256xf32>
    %c61_79 = arith.constant 61 : index
    %541 = memref.load %arg5[%c61_79] : memref<81xf32, #tpu.memory_space<smem>>
    %542 = vector.broadcast %541 : f32 to vector<2x256xf32>
    %543 = arith.mulf %542, %532 : vector<2x256xf32>
    %544 = arith.addf %529, %543 : vector<2x256xf32>
    %c239_i32_80 = arith.constant 239 : i32
    %545 = tpu.dynamic_rotate %417 by %c239_i32_80 dim 1 : vector<2x256xf32>, i32 -> vector<2x256xf32>
    %546 = vector.broadcast %7 : vector<1x256xf32> to vector<2x256xf32>
    %547 = arith.mulf %545, %546 : vector<2x256xf32>
    %c8_81 = arith.constant 8 : index
    %548 = memref.load %arg5[%c8_81] : memref<81xf32, #tpu.memory_space<smem>>
    %549 = vector.broadcast %548 : f32 to vector<2x256xf32>
    %550 = arith.mulf %549, %547 : vector<2x256xf32>
    %551 = arith.addf %536, %550 : vector<2x256xf32>
    %c35_82 = arith.constant 35 : index
    %552 = memref.load %arg5[%c35_82] : memref<81xf32, #tpu.memory_space<smem>>
    %553 = vector.broadcast %552 : f32 to vector<2x256xf32>
    %554 = arith.mulf %553, %547 : vector<2x256xf32>
    %555 = arith.addf %540, %554 : vector<2x256xf32>
    %c62_83 = arith.constant 62 : index
    %556 = memref.load %arg5[%c62_83] : memref<81xf32, #tpu.memory_space<smem>>
    %557 = vector.broadcast %556 : f32 to vector<2x256xf32>
    %558 = arith.mulf %557, %547 : vector<2x256xf32>
    %559 = arith.addf %544, %558 : vector<2x256xf32>
    %c17_i32_84 = arith.constant 17 : i32
    %560 = tpu.dynamic_rotate %419 by %c17_i32_84 dim 1 : vector<2x256xf32>, i32 -> vector<2x256xf32>
    %561 = vector.broadcast %0 : vector<1x256xf32> to vector<2x256xf32>
    %562 = arith.mulf %560, %561 : vector<2x256xf32>
    %c9_85 = arith.constant 9 : index
    %563 = memref.load %arg5[%c9_85] : memref<81xf32, #tpu.memory_space<smem>>
    %564 = vector.broadcast %563 : f32 to vector<2x256xf32>
    %565 = arith.mulf %564, %562 : vector<2x256xf32>
    %566 = arith.addf %551, %565 : vector<2x256xf32>
    %c36_86 = arith.constant 36 : index
    %567 = memref.load %arg5[%c36_86] : memref<81xf32, #tpu.memory_space<smem>>
    %568 = vector.broadcast %567 : f32 to vector<2x256xf32>
    %569 = arith.mulf %568, %562 : vector<2x256xf32>
    %570 = arith.addf %555, %569 : vector<2x256xf32>
    %c63_87 = arith.constant 63 : index
    %571 = memref.load %arg5[%c63_87] : memref<81xf32, #tpu.memory_space<smem>>
    %572 = vector.broadcast %571 : f32 to vector<2x256xf32>
    %573 = arith.mulf %572, %562 : vector<2x256xf32>
    %574 = arith.addf %559, %573 : vector<2x256xf32>
    %c16_i32_88 = arith.constant 16 : i32
    %575 = tpu.dynamic_rotate %419 by %c16_i32_88 dim 1 : vector<2x256xf32>, i32 -> vector<2x256xf32>
    %576 = vector.broadcast %1 : vector<1x256xf32> to vector<2x256xf32>
    %577 = arith.mulf %575, %576 : vector<2x256xf32>
    %c10_89 = arith.constant 10 : index
    %578 = memref.load %arg5[%c10_89] : memref<81xf32, #tpu.memory_space<smem>>
    %579 = vector.broadcast %578 : f32 to vector<2x256xf32>
    %580 = arith.mulf %579, %577 : vector<2x256xf32>
    %581 = arith.addf %566, %580 : vector<2x256xf32>
    %c37_90 = arith.constant 37 : index
    %582 = memref.load %arg5[%c37_90] : memref<81xf32, #tpu.memory_space<smem>>
    %583 = vector.broadcast %582 : f32 to vector<2x256xf32>
    %584 = arith.mulf %583, %577 : vector<2x256xf32>
    %585 = arith.addf %570, %584 : vector<2x256xf32>
    %c64_91 = arith.constant 64 : index
    %586 = memref.load %arg5[%c64_91] : memref<81xf32, #tpu.memory_space<smem>>
    %587 = vector.broadcast %586 : f32 to vector<2x256xf32>
    %588 = arith.mulf %587, %577 : vector<2x256xf32>
    %589 = arith.addf %574, %588 : vector<2x256xf32>
    %c15_i32_92 = arith.constant 15 : i32
    %590 = tpu.dynamic_rotate %419 by %c15_i32_92 dim 1 : vector<2x256xf32>, i32 -> vector<2x256xf32>
    %591 = vector.broadcast %2 : vector<1x256xf32> to vector<2x256xf32>
    %592 = arith.mulf %590, %591 : vector<2x256xf32>
    %c11_93 = arith.constant 11 : index
    %593 = memref.load %arg5[%c11_93] : memref<81xf32, #tpu.memory_space<smem>>
    %594 = vector.broadcast %593 : f32 to vector<2x256xf32>
    %595 = arith.mulf %594, %592 : vector<2x256xf32>
    %596 = arith.addf %581, %595 : vector<2x256xf32>
    %c38_94 = arith.constant 38 : index
    %597 = memref.load %arg5[%c38_94] : memref<81xf32, #tpu.memory_space<smem>>
    %598 = vector.broadcast %597 : f32 to vector<2x256xf32>
    %599 = arith.mulf %598, %592 : vector<2x256xf32>
    %600 = arith.addf %585, %599 : vector<2x256xf32>
    %c65_95 = arith.constant 65 : index
    %601 = memref.load %arg5[%c65_95] : memref<81xf32, #tpu.memory_space<smem>>
    %602 = vector.broadcast %601 : f32 to vector<2x256xf32>
    %603 = arith.mulf %602, %592 : vector<2x256xf32>
    %604 = arith.addf %589, %603 : vector<2x256xf32>
    %c1_i32_96 = arith.constant 1 : i32
    %605 = tpu.dynamic_rotate %419 by %c1_i32_96 dim 1 : vector<2x256xf32>, i32 -> vector<2x256xf32>
    %606 = vector.broadcast %3 : vector<1x256xf32> to vector<2x256xf32>
    %607 = arith.mulf %605, %606 : vector<2x256xf32>
    %c12_97 = arith.constant 12 : index
    %608 = memref.load %arg5[%c12_97] : memref<81xf32, #tpu.memory_space<smem>>
    %609 = vector.broadcast %608 : f32 to vector<2x256xf32>
    %610 = arith.mulf %609, %607 : vector<2x256xf32>
    %611 = arith.addf %596, %610 : vector<2x256xf32>
    %c39_98 = arith.constant 39 : index
    %612 = memref.load %arg5[%c39_98] : memref<81xf32, #tpu.memory_space<smem>>
    %613 = vector.broadcast %612 : f32 to vector<2x256xf32>
    %614 = arith.mulf %613, %607 : vector<2x256xf32>
    %615 = arith.addf %600, %614 : vector<2x256xf32>
    %c66_99 = arith.constant 66 : index
    %616 = memref.load %arg5[%c66_99] : memref<81xf32, #tpu.memory_space<smem>>
    %617 = vector.broadcast %616 : f32 to vector<2x256xf32>
    %618 = arith.mulf %617, %607 : vector<2x256xf32>
    %619 = arith.addf %604, %618 : vector<2x256xf32>
    %c13_100 = arith.constant 13 : index
    %620 = memref.load %arg5[%c13_100] : memref<81xf32, #tpu.memory_space<smem>>
    %621 = vector.broadcast %620 : f32 to vector<2x256xf32>
    %622 = arith.mulf %621, %419 : vector<2x256xf32>
    %623 = arith.addf %611, %622 : vector<2x256xf32>
    %c40_101 = arith.constant 40 : index
    %624 = memref.load %arg5[%c40_101] : memref<81xf32, #tpu.memory_space<smem>>
    %625 = vector.broadcast %624 : f32 to vector<2x256xf32>
    %626 = arith.mulf %625, %419 : vector<2x256xf32>
    %627 = arith.addf %615, %626 : vector<2x256xf32>
    %c67_102 = arith.constant 67 : index
    %628 = memref.load %arg5[%c67_102] : memref<81xf32, #tpu.memory_space<smem>>
    %629 = vector.broadcast %628 : f32 to vector<2x256xf32>
    %630 = arith.mulf %629, %419 : vector<2x256xf32>
    %631 = arith.addf %619, %630 : vector<2x256xf32>
    %c255_i32_103 = arith.constant 255 : i32
    %632 = tpu.dynamic_rotate %419 by %c255_i32_103 dim 1 : vector<2x256xf32>, i32 -> vector<2x256xf32>
    %633 = vector.broadcast %4 : vector<1x256xf32> to vector<2x256xf32>
    %634 = arith.mulf %632, %633 : vector<2x256xf32>
    %c14_104 = arith.constant 14 : index
    %635 = memref.load %arg5[%c14_104] : memref<81xf32, #tpu.memory_space<smem>>
    %636 = vector.broadcast %635 : f32 to vector<2x256xf32>
    %637 = arith.mulf %636, %634 : vector<2x256xf32>
    %638 = arith.addf %623, %637 : vector<2x256xf32>
    %c41_105 = arith.constant 41 : index
    %639 = memref.load %arg5[%c41_105] : memref<81xf32, #tpu.memory_space<smem>>
    %640 = vector.broadcast %639 : f32 to vector<2x256xf32>
    %641 = arith.mulf %640, %634 : vector<2x256xf32>
    %642 = arith.addf %627, %641 : vector<2x256xf32>
    %c68_106 = arith.constant 68 : index
    %643 = memref.load %arg5[%c68_106] : memref<81xf32, #tpu.memory_space<smem>>
    %644 = vector.broadcast %643 : f32 to vector<2x256xf32>
    %645 = arith.mulf %644, %634 : vector<2x256xf32>
    %646 = arith.addf %631, %645 : vector<2x256xf32>
    %c241_i32_107 = arith.constant 241 : i32
    %647 = tpu.dynamic_rotate %419 by %c241_i32_107 dim 1 : vector<2x256xf32>, i32 -> vector<2x256xf32>
    %648 = vector.broadcast %5 : vector<1x256xf32> to vector<2x256xf32>
    %649 = arith.mulf %647, %648 : vector<2x256xf32>
    %c15_108 = arith.constant 15 : index
    %650 = memref.load %arg5[%c15_108] : memref<81xf32, #tpu.memory_space<smem>>
    %651 = vector.broadcast %650 : f32 to vector<2x256xf32>
    %652 = arith.mulf %651, %649 : vector<2x256xf32>
    %653 = arith.addf %638, %652 : vector<2x256xf32>
    %c42_109 = arith.constant 42 : index
    %654 = memref.load %arg5[%c42_109] : memref<81xf32, #tpu.memory_space<smem>>
    %655 = vector.broadcast %654 : f32 to vector<2x256xf32>
    %656 = arith.mulf %655, %649 : vector<2x256xf32>
    %657 = arith.addf %642, %656 : vector<2x256xf32>
    %c69_110 = arith.constant 69 : index
    %658 = memref.load %arg5[%c69_110] : memref<81xf32, #tpu.memory_space<smem>>
    %659 = vector.broadcast %658 : f32 to vector<2x256xf32>
    %660 = arith.mulf %659, %649 : vector<2x256xf32>
    %661 = arith.addf %646, %660 : vector<2x256xf32>
    %c240_i32_111 = arith.constant 240 : i32
    %662 = tpu.dynamic_rotate %419 by %c240_i32_111 dim 1 : vector<2x256xf32>, i32 -> vector<2x256xf32>
    %663 = vector.broadcast %6 : vector<1x256xf32> to vector<2x256xf32>
    %664 = arith.mulf %662, %663 : vector<2x256xf32>
    %c16_112 = arith.constant 16 : index
    %665 = memref.load %arg5[%c16_112] : memref<81xf32, #tpu.memory_space<smem>>
    %666 = vector.broadcast %665 : f32 to vector<2x256xf32>
    %667 = arith.mulf %666, %664 : vector<2x256xf32>
    %668 = arith.addf %653, %667 : vector<2x256xf32>
    %c43_113 = arith.constant 43 : index
    %669 = memref.load %arg5[%c43_113] : memref<81xf32, #tpu.memory_space<smem>>
    %670 = vector.broadcast %669 : f32 to vector<2x256xf32>
    %671 = arith.mulf %670, %664 : vector<2x256xf32>
    %672 = arith.addf %657, %671 : vector<2x256xf32>
    %c70_114 = arith.constant 70 : index
    %673 = memref.load %arg5[%c70_114] : memref<81xf32, #tpu.memory_space<smem>>
    %674 = vector.broadcast %673 : f32 to vector<2x256xf32>
    %675 = arith.mulf %674, %664 : vector<2x256xf32>
    %676 = arith.addf %661, %675 : vector<2x256xf32>
    %c239_i32_115 = arith.constant 239 : i32
    %677 = tpu.dynamic_rotate %419 by %c239_i32_115 dim 1 : vector<2x256xf32>, i32 -> vector<2x256xf32>
    %678 = vector.broadcast %7 : vector<1x256xf32> to vector<2x256xf32>
    %679 = arith.mulf %677, %678 : vector<2x256xf32>
    %c17_116 = arith.constant 17 : index
    %680 = memref.load %arg5[%c17_116] : memref<81xf32, #tpu.memory_space<smem>>
    %681 = vector.broadcast %680 : f32 to vector<2x256xf32>
    %682 = arith.mulf %681, %679 : vector<2x256xf32>
    %683 = arith.addf %668, %682 : vector<2x256xf32>
    %c44_117 = arith.constant 44 : index
    %684 = memref.load %arg5[%c44_117] : memref<81xf32, #tpu.memory_space<smem>>
    %685 = vector.broadcast %684 : f32 to vector<2x256xf32>
    %686 = arith.mulf %685, %679 : vector<2x256xf32>
    %687 = arith.addf %672, %686 : vector<2x256xf32>
    %c71_118 = arith.constant 71 : index
    %688 = memref.load %arg5[%c71_118] : memref<81xf32, #tpu.memory_space<smem>>
    %689 = vector.broadcast %688 : f32 to vector<2x256xf32>
    %690 = arith.mulf %689, %679 : vector<2x256xf32>
    %691 = arith.addf %676, %690 : vector<2x256xf32>
    %c17_i32_119 = arith.constant 17 : i32
    %692 = tpu.dynamic_rotate %421 by %c17_i32_119 dim 1 : vector<2x256xf32>, i32 -> vector<2x256xf32>
    %693 = vector.broadcast %0 : vector<1x256xf32> to vector<2x256xf32>
    %694 = arith.mulf %692, %693 : vector<2x256xf32>
    %c18_120 = arith.constant 18 : index
    %695 = memref.load %arg5[%c18_120] : memref<81xf32, #tpu.memory_space<smem>>
    %696 = vector.broadcast %695 : f32 to vector<2x256xf32>
    %697 = arith.mulf %696, %694 : vector<2x256xf32>
    %698 = arith.addf %683, %697 : vector<2x256xf32>
    %c45_121 = arith.constant 45 : index
    %699 = memref.load %arg5[%c45_121] : memref<81xf32, #tpu.memory_space<smem>>
    %700 = vector.broadcast %699 : f32 to vector<2x256xf32>
    %701 = arith.mulf %700, %694 : vector<2x256xf32>
    %702 = arith.addf %687, %701 : vector<2x256xf32>
    %c72_122 = arith.constant 72 : index
    %703 = memref.load %arg5[%c72_122] : memref<81xf32, #tpu.memory_space<smem>>
    %704 = vector.broadcast %703 : f32 to vector<2x256xf32>
    %705 = arith.mulf %704, %694 : vector<2x256xf32>
    %706 = arith.addf %691, %705 : vector<2x256xf32>
    %c16_i32_123 = arith.constant 16 : i32
    %707 = tpu.dynamic_rotate %421 by %c16_i32_123 dim 1 : vector<2x256xf32>, i32 -> vector<2x256xf32>
    %708 = vector.broadcast %1 : vector<1x256xf32> to vector<2x256xf32>
    %709 = arith.mulf %707, %708 : vector<2x256xf32>
    %c19_124 = arith.constant 19 : index
    %710 = memref.load %arg5[%c19_124] : memref<81xf32, #tpu.memory_space<smem>>
    %711 = vector.broadcast %710 : f32 to vector<2x256xf32>
    %712 = arith.mulf %711, %709 : vector<2x256xf32>
    %713 = arith.addf %698, %712 : vector<2x256xf32>
    %c46_125 = arith.constant 46 : index
    %714 = memref.load %arg5[%c46_125] : memref<81xf32, #tpu.memory_space<smem>>
    %715 = vector.broadcast %714 : f32 to vector<2x256xf32>
    %716 = arith.mulf %715, %709 : vector<2x256xf32>
    %717 = arith.addf %702, %716 : vector<2x256xf32>
    %c73_126 = arith.constant 73 : index
    %718 = memref.load %arg5[%c73_126] : memref<81xf32, #tpu.memory_space<smem>>
    %719 = vector.broadcast %718 : f32 to vector<2x256xf32>
    %720 = arith.mulf %719, %709 : vector<2x256xf32>
    %721 = arith.addf %706, %720 : vector<2x256xf32>
    %c15_i32_127 = arith.constant 15 : i32
    %722 = tpu.dynamic_rotate %421 by %c15_i32_127 dim 1 : vector<2x256xf32>, i32 -> vector<2x256xf32>
    %723 = vector.broadcast %2 : vector<1x256xf32> to vector<2x256xf32>
    %724 = arith.mulf %722, %723 : vector<2x256xf32>
    %c20_128 = arith.constant 20 : index
    %725 = memref.load %arg5[%c20_128] : memref<81xf32, #tpu.memory_space<smem>>
    %726 = vector.broadcast %725 : f32 to vector<2x256xf32>
    %727 = arith.mulf %726, %724 : vector<2x256xf32>
    %728 = arith.addf %713, %727 : vector<2x256xf32>
    %c47_129 = arith.constant 47 : index
    %729 = memref.load %arg5[%c47_129] : memref<81xf32, #tpu.memory_space<smem>>
    %730 = vector.broadcast %729 : f32 to vector<2x256xf32>
    %731 = arith.mulf %730, %724 : vector<2x256xf32>
    %732 = arith.addf %717, %731 : vector<2x256xf32>
    %c74_130 = arith.constant 74 : index
    %733 = memref.load %arg5[%c74_130] : memref<81xf32, #tpu.memory_space<smem>>
    %734 = vector.broadcast %733 : f32 to vector<2x256xf32>
    %735 = arith.mulf %734, %724 : vector<2x256xf32>
    %736 = arith.addf %721, %735 : vector<2x256xf32>
    %c1_i32_131 = arith.constant 1 : i32
    %737 = tpu.dynamic_rotate %421 by %c1_i32_131 dim 1 : vector<2x256xf32>, i32 -> vector<2x256xf32>
    %738 = vector.broadcast %3 : vector<1x256xf32> to vector<2x256xf32>
    %739 = arith.mulf %737, %738 : vector<2x256xf32>
    %c21_132 = arith.constant 21 : index
    %740 = memref.load %arg5[%c21_132] : memref<81xf32, #tpu.memory_space<smem>>
    %741 = vector.broadcast %740 : f32 to vector<2x256xf32>
    %742 = arith.mulf %741, %739 : vector<2x256xf32>
    %743 = arith.addf %728, %742 : vector<2x256xf32>
    %c48_133 = arith.constant 48 : index
    %744 = memref.load %arg5[%c48_133] : memref<81xf32, #tpu.memory_space<smem>>
    %745 = vector.broadcast %744 : f32 to vector<2x256xf32>
    %746 = arith.mulf %745, %739 : vector<2x256xf32>
    %747 = arith.addf %732, %746 : vector<2x256xf32>
    %c75_134 = arith.constant 75 : index
    %748 = memref.load %arg5[%c75_134] : memref<81xf32, #tpu.memory_space<smem>>
    %749 = vector.broadcast %748 : f32 to vector<2x256xf32>
    %750 = arith.mulf %749, %739 : vector<2x256xf32>
    %751 = arith.addf %736, %750 : vector<2x256xf32>
    %c22_135 = arith.constant 22 : index
    %752 = memref.load %arg5[%c22_135] : memref<81xf32, #tpu.memory_space<smem>>
    %753 = vector.broadcast %752 : f32 to vector<2x256xf32>
    %754 = arith.mulf %753, %421 : vector<2x256xf32>
    %755 = arith.addf %743, %754 : vector<2x256xf32>
    %c49_136 = arith.constant 49 : index
    %756 = memref.load %arg5[%c49_136] : memref<81xf32, #tpu.memory_space<smem>>
    %757 = vector.broadcast %756 : f32 to vector<2x256xf32>
    %758 = arith.mulf %757, %421 : vector<2x256xf32>
    %759 = arith.addf %747, %758 : vector<2x256xf32>
    %c76_137 = arith.constant 76 : index
    %760 = memref.load %arg5[%c76_137] : memref<81xf32, #tpu.memory_space<smem>>
    %761 = vector.broadcast %760 : f32 to vector<2x256xf32>
    %762 = arith.mulf %761, %421 : vector<2x256xf32>
    %763 = arith.addf %751, %762 : vector<2x256xf32>
    %c255_i32_138 = arith.constant 255 : i32
    %764 = tpu.dynamic_rotate %421 by %c255_i32_138 dim 1 : vector<2x256xf32>, i32 -> vector<2x256xf32>
    %765 = vector.broadcast %4 : vector<1x256xf32> to vector<2x256xf32>
    %766 = arith.mulf %764, %765 : vector<2x256xf32>
    %c23_139 = arith.constant 23 : index
    %767 = memref.load %arg5[%c23_139] : memref<81xf32, #tpu.memory_space<smem>>
    %768 = vector.broadcast %767 : f32 to vector<2x256xf32>
    %769 = arith.mulf %768, %766 : vector<2x256xf32>
    %770 = arith.addf %755, %769 : vector<2x256xf32>
    %c50_140 = arith.constant 50 : index
    %771 = memref.load %arg5[%c50_140] : memref<81xf32, #tpu.memory_space<smem>>
    %772 = vector.broadcast %771 : f32 to vector<2x256xf32>
    %773 = arith.mulf %772, %766 : vector<2x256xf32>
    %774 = arith.addf %759, %773 : vector<2x256xf32>
    %c77_141 = arith.constant 77 : index
    %775 = memref.load %arg5[%c77_141] : memref<81xf32, #tpu.memory_space<smem>>
    %776 = vector.broadcast %775 : f32 to vector<2x256xf32>
    %777 = arith.mulf %776, %766 : vector<2x256xf32>
    %778 = arith.addf %763, %777 : vector<2x256xf32>
    %c241_i32_142 = arith.constant 241 : i32
    %779 = tpu.dynamic_rotate %421 by %c241_i32_142 dim 1 : vector<2x256xf32>, i32 -> vector<2x256xf32>
    %780 = vector.broadcast %5 : vector<1x256xf32> to vector<2x256xf32>
    %781 = arith.mulf %779, %780 : vector<2x256xf32>
    %c24_143 = arith.constant 24 : index
    %782 = memref.load %arg5[%c24_143] : memref<81xf32, #tpu.memory_space<smem>>
    %783 = vector.broadcast %782 : f32 to vector<2x256xf32>
    %784 = arith.mulf %783, %781 : vector<2x256xf32>
    %785 = arith.addf %770, %784 : vector<2x256xf32>
    %c51_144 = arith.constant 51 : index
    %786 = memref.load %arg5[%c51_144] : memref<81xf32, #tpu.memory_space<smem>>
    %787 = vector.broadcast %786 : f32 to vector<2x256xf32>
    %788 = arith.mulf %787, %781 : vector<2x256xf32>
    %789 = arith.addf %774, %788 : vector<2x256xf32>
    %c78_145 = arith.constant 78 : index
    %790 = memref.load %arg5[%c78_145] : memref<81xf32, #tpu.memory_space<smem>>
    %791 = vector.broadcast %790 : f32 to vector<2x256xf32>
    %792 = arith.mulf %791, %781 : vector<2x256xf32>
    %793 = arith.addf %778, %792 : vector<2x256xf32>
    %c240_i32_146 = arith.constant 240 : i32
    %794 = tpu.dynamic_rotate %421 by %c240_i32_146 dim 1 : vector<2x256xf32>, i32 -> vector<2x256xf32>
    %795 = vector.broadcast %6 : vector<1x256xf32> to vector<2x256xf32>
    %796 = arith.mulf %794, %795 : vector<2x256xf32>
    %c25_147 = arith.constant 25 : index
    %797 = memref.load %arg5[%c25_147] : memref<81xf32, #tpu.memory_space<smem>>
    %798 = vector.broadcast %797 : f32 to vector<2x256xf32>
    %799 = arith.mulf %798, %796 : vector<2x256xf32>
    %800 = arith.addf %785, %799 : vector<2x256xf32>
    %c52_148 = arith.constant 52 : index
    %801 = memref.load %arg5[%c52_148] : memref<81xf32, #tpu.memory_space<smem>>
    %802 = vector.broadcast %801 : f32 to vector<2x256xf32>
    %803 = arith.mulf %802, %796 : vector<2x256xf32>
    %804 = arith.addf %789, %803 : vector<2x256xf32>
    %c79_149 = arith.constant 79 : index
    %805 = memref.load %arg5[%c79_149] : memref<81xf32, #tpu.memory_space<smem>>
    %806 = vector.broadcast %805 : f32 to vector<2x256xf32>
    %807 = arith.mulf %806, %796 : vector<2x256xf32>
    %808 = arith.addf %793, %807 : vector<2x256xf32>
    %c239_i32_150 = arith.constant 239 : i32
    %809 = tpu.dynamic_rotate %421 by %c239_i32_150 dim 1 : vector<2x256xf32>, i32 -> vector<2x256xf32>
    %810 = vector.broadcast %7 : vector<1x256xf32> to vector<2x256xf32>
    %811 = arith.mulf %809, %810 : vector<2x256xf32>
    %c26_151 = arith.constant 26 : index
    %812 = memref.load %arg5[%c26_151] : memref<81xf32, #tpu.memory_space<smem>>
    %813 = vector.broadcast %812 : f32 to vector<2x256xf32>
    %814 = arith.mulf %813, %811 : vector<2x256xf32>
    %815 = arith.addf %800, %814 : vector<2x256xf32>
    %c53_152 = arith.constant 53 : index
    %816 = memref.load %arg5[%c53_152] : memref<81xf32, #tpu.memory_space<smem>>
    %817 = vector.broadcast %816 : f32 to vector<2x256xf32>
    %818 = arith.mulf %817, %811 : vector<2x256xf32>
    %819 = arith.addf %804, %818 : vector<2x256xf32>
    %c80_153 = arith.constant 80 : index
    %820 = memref.load %arg5[%c80_153] : memref<81xf32, #tpu.memory_space<smem>>
    %821 = vector.broadcast %820 : f32 to vector<2x256xf32>
    %822 = arith.mulf %821, %811 : vector<2x256xf32>
    %823 = arith.addf %808, %822 : vector<2x256xf32>
    %cst_154 = arith.constant 0.000000e+00 : f32
    %824 = vector.broadcast %cst_154 : f32 to vector<2x256xf32>
    %825 = arith.maximumf %815, %824 : vector<2x256xf32>
    %826 = arith.addf %825, %9 : vector<2x256xf32>
    %c0_155 = arith.constant 0 : index
    %c0_156 = arith.constant 0 : index
    %c0_157 = arith.constant 0 : index
    %827 = vector.load %arg7[%c0_155, %c0_156, %c0_157] : memref<2x3x256xf32, #tpu.memory_space<vmem>>, vector<2x1x256xf32>
    %828 = vector.shape_cast %827 : vector<2x1x256xf32> to vector<2x256xf32>
    %829 = vector.shape_cast %826 : vector<2x256xf32> to vector<2x1x256xf32>
    tpu.vector_store %arg7[%c0_155, %c0_156, %c0_157], %829 {strides = array<i32>} : memref<2x3x256xf32, #tpu.memory_space<vmem>>, vector<2x1x256xf32>,
    %cst_158 = arith.constant 0.000000e+00 : f32
    %830 = vector.broadcast %cst_158 : f32 to vector<2x256xf32>
    %831 = arith.maximumf %819, %830 : vector<2x256xf32>
    %832 = arith.addf %831, %11 : vector<2x256xf32>
    %c0_159 = arith.constant 0 : index
    %c1_160 = arith.constant 1 : index
    %c0_161 = arith.constant 0 : index
    %833 = vector.load %arg7[%c0_159, %c1_160, %c0_161] : memref<2x3x256xf32, #tpu.memory_space<vmem>>, vector<2x1x256xf32>
    %834 = vector.shape_cast %833 : vector<2x1x256xf32> to vector<2x256xf32>
    %835 = vector.shape_cast %832 : vector<2x256xf32> to vector<2x1x256xf32>
    tpu.vector_store %arg7[%c0_159, %c1_160, %c0_161], %835 {strides = array<i32>} : memref<2x3x256xf32, #tpu.memory_space<vmem>>, vector<2x1x256xf32>,
    %cst_162 = arith.constant 0.000000e+00 : f32
    %836 = vector.broadcast %cst_162 : f32 to vector<2x256xf32>
    %837 = arith.maximumf %823, %836 : vector<2x256xf32>
    %838 = arith.addf %837, %13 : vector<2x256xf32>
    %c0_163 = arith.constant 0 : index
    %c2_164 = arith.constant 2 : index
    %c0_165 = arith.constant 0 : index
    %839 = vector.load %arg7[%c0_163, %c2_164, %c0_165] : memref<2x3x256xf32, #tpu.memory_space<vmem>>, vector<2x1x256xf32>
    %840 = vector.shape_cast %839 : vector<2x1x256xf32> to vector<2x256xf32>
    %841 = vector.shape_cast %838 : vector<2x256xf32> to vector<2x1x256xf32>
    tpu.vector_store %arg7[%c0_163, %c2_164, %c0_165], %841 {strides = array<i32>} : memref<2x3x256xf32, #tpu.memory_space<vmem>>, vector<2x1x256xf32>,
    return
  }
  func.func @transform_0(%arg0: i32) -> (i32, i32, i32) {
    %c0_i32 = arith.constant 0 : i32
    %c0_i32_0 = arith.constant 0 : i32
    %c0_i32_1 = arith.constant 0 : i32
    return %arg0, %c0_i32, %c0_i32_0 : i32, i32, i32
  }
  func.func @transform_1(%arg0: i32) -> (i32, i32) {
    %c0_i32 = arith.constant 0 : i32
    %c0_i32_0 = arith.constant 0 : i32
    %c0_i32_1 = arith.constant 0 : i32
    return %c0_i32, %c0_i32_0 : i32, i32
  }
  func.func @transform_2(%arg0: i32) -> i32 {
    %c0_i32 = arith.constant 0 : i32
    %c0_i32_0 = arith.constant 0 : i32
    return %c0_i32 : i32
  }
  func.func @transform_3(%arg0: i32) -> i32 {
    %c0_i32 = arith.constant 0 : i32
    %c0_i32_0 = arith.constant 0 : i32
    return %c0_i32 : i32
  }
  func.func @transform_4(%arg0: i32) -> i32 {
    %c0_i32 = arith.constant 0 : i32
    %c0_i32_0 = arith.constant 0 : i32
    return %c0_i32 : i32
  }
  func.func @transform_5(%arg0: i32) -> i32 {
    %c0_i32 = arith.constant 0 : i32
    %c0_i32_0 = arith.constant 0 : i32
    return %c0_i32 : i32
  }
  func.func @transform_6(%arg0: i32) -> (i32, i32, i32) {
    %c0_i32 = arith.constant 0 : i32
    %c0_i32_0 = arith.constant 0 : i32
    %c0_i32_1 = arith.constant 0 : i32
    return %arg0, %c0_i32, %c0_i32_0 : i32, i32, i32
  }
}

</mosaic_0001>

<llo_original>
// kernel: tpu_custom_call.1
$region0: #{tpu_custom_call.1}
  #allocation0 [shape = 'u32[]', space=smem, size = 0x4, offset = 0x4, fixed_abs, tag = 'smem constant byte address 0x4 - core index']
  #allocation1 [shape = 'u32[144,128]{1,0:T(1,128)}', space=vmem, size = 0x12000, scoped, tag = 'internal scratch']
  %s0 = inlined_call_operand.vmem [shape: f32[2,3,256], index: 0, kind: input, shape index: {}]
  %s1 = inlined_call_operand.hbm [shape: f32[9,256], index: 1, kind: input, shape index: {}]
  %s2 = inlined_call_operand.vmem [shape: f32[81], index: 2, kind: input, shape index: {}]
  %s3 = inlined_call_operand.vmem [shape: f32[3], index: 3, kind: input, shape index: {}]
  %s4 = inlined_call_operand.vmem [shape: f32[81], index: 4, kind: input, shape index: {}]
  %s5 = inlined_call_operand.vmem [shape: f32[3], index: 5, kind: input, shape index: {}]
  %s6 = inlined_call_operand.vmem [shape: f32[2,3,256], index: 6, kind: output, shape index: {}]
  %s7 = sld [smem:[#allocation0]]
  $region54: #{tpu_custom_call.1} parent=0
    _
  %s9 = ssub.s32 1, %s7
  %s10 = scalar_select 0, %s9, %s7
  $region1: #{tpu_custom_call.1} parent=0
    #allocation2 [shape = 'u8[16384]{0}', space=vmem, size = 0x4000, scoped, tag = 'input window, operand 1, single buffered']
    #allocation3 [shape = 's32[1]{0}', space=sflag, size = 0x4, scoped, tag = 'scoped memory for tpu_custom_call.1']
    #allocation4 [shape = 's32[1]{0}', space=sflag, size = 0x4, scoped, tag = 'scoped memory for tpu_custom_call.1']
    #allocation5 [shape = 'u8[512]{0}', space=smem, size = 0x200, scoped, tag = 'input window, operand 2, single buffered']
    #allocation6 [shape = 'u8[512]{0}', space=smem, size = 0x200, scoped, tag = 'input window, operand 3, single buffered']
    #allocation7 [shape = 's32[1]{0}', space=sflag, size = 0x4, scoped, tag = 'scoped memory for tpu_custom_call.1']
    #allocation8 [shape = 'u8[512]{0}', space=smem, size = 0x200, scoped, tag = 'input window, operand 4, single buffered']
    #allocation9 [shape = 'u8[512]{0}', space=smem, size = 0x200, scoped, tag = 'input window, operand 5, single buffered']
    #allocation10 [shape = 's32[1]{0}', space=sflag, size = 0x4, scoped, tag = 'scoped memory for tpu_custom_call.1']
    %11 = vsyncpa [#allocation3], 0
    %12 = vsyncpa [#allocation4], 0
    %13 = vsyncpa [#allocation7], 0
    %14 = vsyncpa [#allocation10], 0
    // Predicated region
    $region2: #{tpu_custom_call.1} parent=1 // pred_check
      _
    $region3: #{tpu_custom_call.1} parent=1 // pred_check_branch
      %16 = sbr.rel (0) target = $region5
    $region4: #{tpu_custom_call.1} parent=1 // pred_region
      _
    $region5: #{tpu_custom_call.1} parent=1 // pred_fallthru
      _
    // Predicated region
    $region6: #{tpu_custom_call.1} parent=1 // pred_check
      _
    $region7: #{tpu_custom_call.1} parent=1 // pred_check_branch
      %18 = sbr.rel (0) target = $region9
    $region8: #{tpu_custom_call.1} parent=1 // pred_region
      %s20 = ssub.s32 512, 512
      %21 = vsyncadd [#allocation3], %s20
      %s22 = sshll.u32 [#allocation2], 4
      %s23 = int_to_ptr.vmem [resolvable:$true] %s22
      %28 = dma.hbm_to_vmem [thread:$0]  %s1, 512, %s23, [#allocation3], 256, 256, 16
    $region9: #{tpu_custom_call.1} parent=1 // pred_fallthru
      _
    // Predicated region
    $region10: #{tpu_custom_call.1} parent=1 // pred_check
      _
    $region11: #{tpu_custom_call.1} parent=1 // pred_check_branch
      %30 = sbr.rel (0) target = $region13
    $region12: #{tpu_custom_call.1} parent=1 // pred_region
      %s32 = ssub.s32 16, 16
      %33 = vsyncadd [#allocation4], %s32
      %s35 = sshll.u32 %s2, 4
      %s36 = int_to_ptr.vmem [resolvable:$true] %s35
      %38 = dma.vmem_to_smem %s36, 16, [#allocation5], [#allocation4]
    $region13: #{tpu_custom_call.1} parent=1 // pred_fallthru
      _
    // Predicated region
    $region14: #{tpu_custom_call.1} parent=1 // pred_check
      _
    $region15: #{tpu_custom_call.1} parent=1 // pred_check_branch
      %40 = sbr.rel (0) target = $region17
    $region16: #{tpu_custom_call.1} parent=1 // pred_region
      %s42 = ssub.s32 16, 16
      %43 = vsyncadd [#allocation7], %s42
      %s45 = sshll.u32 %s3, 4
      %s46 = int_to_ptr.vmem [resolvable:$true] %s45
      %48 = dma.vmem_to_smem %s46, 16, [#allocation6], [#allocation7]
    $region17: #{tpu_custom_call.1} parent=1 // pred_fallthru
      _
    // Predicated region
    $region18: #{tpu_custom_call.1} parent=1 // pred_check
      _
    $region19: #{tpu_custom_call.1} parent=1 // pred_check_branch
      %50 = sbr.rel (0) target = $region21
    $region20: #{tpu_custom_call.1} parent=1 // pred_region
      %s52 = ssub.s32 16, 16
      %53 = vsyncadd [#allocation7], %s52
      %s55 = sshll.u32 %s4, 4
      %s56 = int_to_ptr.vmem [resolvable:$true] %s55
      %58 = dma.vmem_to_smem %s56, 16, [#allocation8], [#allocation7]
    $region21: #{tpu_custom_call.1} parent=1 // pred_fallthru
      _
    // Predicated region
    $region22: #{tpu_custom_call.1} parent=1 // pred_check
      _
    $region23: #{tpu_custom_call.1} parent=1 // pred_check_branch
      %60 = sbr.rel (0) target = $region25
    $region24: #{tpu_custom_call.1} parent=1 // pred_region
      %s62 = ssub.s32 16, 16
      %63 = vsyncadd [#allocation10], %s62
      %s65 = sshll.u32 %s5, 4
      %s66 = int_to_ptr.vmem [resolvable:$true] %s65
      %68 = dma.vmem_to_smem %s66, 16, [#allocation9], [#allocation10]
    $region25: #{tpu_custom_call.1} parent=1 // pred_fallthru
      _
    // Predicated region
    $region26: #{tpu_custom_call.1} parent=1 // pred_check
      _
    $region27: #{tpu_custom_call.1} parent=1 // pred_check_branch
      %70 = sbr.rel (0) target = $region29
    $region28: #{tpu_custom_call.1} parent=1 // pred_region
      %71 = dma.done [#allocation3], 512
    $region29: #{tpu_custom_call.1} parent=1 // pred_fallthru
      _
    // Predicated region
    $region30: #{tpu_custom_call.1} parent=1 // pred_check
      _
    $region31: #{tpu_custom_call.1} parent=1 // pred_check_branch
      %73 = sbr.rel (0) target = $region33
    $region32: #{tpu_custom_call.1} parent=1 // pred_region
      %74 = dma.done [#allocation4], 16
    $region33: #{tpu_custom_call.1} parent=1 // pred_fallthru
      _
    // Predicated region
    $region34: #{tpu_custom_call.1} parent=1 // pred_check
      _
    $region35: #{tpu_custom_call.1} parent=1 // pred_check_branch
      %76 = sbr.rel (0) target = $region37
    $region36: #{tpu_custom_call.1} parent=1 // pred_region
      %77 = dma.done [#allocation7], 16
    $region37: #{tpu_custom_call.1} parent=1 // pred_fallthru
      _
    // Predicated region
    $region38: #{tpu_custom_call.1} parent=1 // pred_check
      _
    $region39: #{tpu_custom_call.1} parent=1 // pred_check_branch
      %79 = sbr.rel (0) target = $region41
    $region40: #{tpu_custom_call.1} parent=1 // pred_region
      %80 = dma.done [#allocation7], 16
    $region41: #{tpu_custom_call.1} parent=1 // pred_fallthru
      _
    // Predicated region
    $region42: #{tpu_custom_call.1} parent=1 // pred_check
      _
    $region43: #{tpu_custom_call.1} parent=1 // pred_check_branch
      %82 = sbr.rel (0) target = $region45
    $region44: #{tpu_custom_call.1} parent=1 // pred_region
      %83 = dma.done [#allocation10], 16
    $region45: #{tpu_custom_call.1} parent=1 // pred_fallthru
      _
    %84 = sfence
    %v85 = vld [vmem:[#allocation2] ss:$8 sm:$0x3]
    %s86 = scalar_lea.vmem [#allocation2], 1
    %v87 = vld [vmem:[%s86] ss:$8 sm:$0x3]
    %s88 = scalar_lea.vmem [#allocation2], 2
    %v89 = vld [vmem:[%s88] ss:$8 sm:$0x3]
    %s90 = scalar_lea.vmem [#allocation2], 3
    %v91 = vld [vmem:[%s90] ss:$8 sm:$0x3]
    %s92 = scalar_lea.vmem [#allocation2], 5
    %v93 = vld [vmem:[%s92] ss:$8 sm:$0x3]
    %s94 = scalar_lea.vmem [#allocation2], 6
    %v95 = vld [vmem:[%s94] ss:$8 sm:$0x3]
    %s96 = scalar_lea.vmem [#allocation2], 7
    %v97 = vld [vmem:[%s96] ss:$8 sm:$0x3]
    %s98 = scalar_lea.vmem [#allocation2], 16
    %v99 = vld [vmem:[%s98] ss:$8 sm:$0x3]
    %v100 = vld [vmem:[%s0] ss:$4 sm:$0x3]
    %s101 = scalar_lea.vmem %s0, 8
    %v102 = vld [vmem:[%s101] ss:$4 sm:$0x3]
    %s103 = scalar_lea.vmem %s0, 1
    %v104 = vld [vmem:[%s103] ss:$4 sm:$0x3]
    %s105 = scalar_lea.vmem %s0, 9
    %v106 = vld [vmem:[%s105] ss:$4 sm:$0x3]
    %s107 = scalar_lea.vmem %s0, 2
    %v108 = vld [vmem:[%s107] ss:$4 sm:$0x3]
    %s109 = scalar_lea.vmem %s0, 10
    %v110 = vld [vmem:[%s109] ss:$4 sm:$0x3]
    %s111 = sld [smem:[#allocation6]]
    %v112 = vstv %s111
    %s113 = sld [smem:[#allocation6 + $0x1]]
    %v114 = vstv %s113
    %s115 = sld [smem:[#allocation6 + $0x2]]
    %v116 = vstv %s115
    %v119 = vcombine.low %v100, %v102
    %v121 = vunpack.c.l.s4 1966171168
    %v122 = vunpack.c.0.s8 %v121
    %v123 = vlaneseq
    %v124 = vshrl.u32 %v123, 7
    %v125 = vsub.s32 %v122, %v124
    %v126 = vrot.slane %v119, %v125
    %v127 = vcombine.high %v126, %v126
    %v129 = vunpack.c.l.s4 1966171168
    %v130 = vunpack.c.0.s8 %v129
    %v131 = vlaneseq
    %v132 = vshrl.u32 %v131, 7
    %v133 = vsub.s32 %v130, %v132
    %v134 = vrot.slane %v126, %v133
    %v136 = vunpack.c.l.s4 1966171168
    %v137 = vunpack.c.0.s8 %v136
    %v138 = vlaneseq
    %v139 = vshrl.u32 %v138, 7
    %v140 = vsub.s32 %v137, %v139
    %v141 = vrot.slane %v127, %v140
    %144 = vrot.lane.b32.xlu0 %v134, 17
    %v145 = vpop.permute.xlu0 %144
    %146 = vrot.lane.b32.xlu0 %v141, 17
    %v147 = vpop.permute.xlu0 %146
    %v148 = vlaneseq
    %v149 = vand.u32 %v148, 127
    %vm150 = vcmp.lt.s32.totalorder %v149, 17
    %v151 = vsel %vm150, %v145, %v147
    %v152 = vsel %vm150, %v147, %v145
    %v154 = vlaneseq
    %v155 = vshrl.u32 %v154, 7
    %v156 = vsub.s32 0, %v155
    %v157 = vrot.slane %v85, %v156
    %v158 = vlaneseq
    %v159 = vshrl.u32 %v158, 7
    %v160 = vsub.s32 1, %v159
    %v161 = vrot.slane %v85, %v160
    %v164 = vmul.f32 %v152, %v157
    %v165 = vmul.f32 %v151, %v161
    %s166 = sld [smem:[#allocation5]]
    %v167 = vstv %s166
    %v168 = vmul.f32 %v167, %v164
    %v169 = vmul.f32 %v167, %v165
    %v170 = vadd.f32 %v112, %v168
    %v171 = vadd.f32 %v112, %v169
    %s172 = sld [smem:[#allocation5 + $0x1b]]
    %v173 = vstv %s172
    %v174 = vmul.f32 %v173, %v164
    %v175 = vmul.f32 %v173, %v165
    %v176 = vadd.f32 %v114, %v174
    %v177 = vadd.f32 %v114, %v175
    %s178 = sld [smem:[#allocation5 + $0x36]]
    %v179 = vstv %s178
    %v180 = vmul.f32 %v179, %v164
    %v181 = vmul.f32 %v179, %v165
    %v182 = vadd.f32 %v116, %v180
    %v183 = vadd.f32 %v116, %v181
    %184 = vrot.lane.b32.xlu0 %v134, 16
    %v185 = vpop.permute.xlu0 %184
    %186 = vrot.lane.b32.xlu0 %v141, 16
    %v187 = vpop.permute.xlu0 %186
    %vm188 = vcmp.lt.s32.totalorder %v149, 16
    %v189 = vsel %vm188, %v185, %v187
    %v190 = vsel %vm188, %v187, %v185
    %v192 = vlaneseq
    %v193 = vshrl.u32 %v192, 7
    %v194 = vsub.s32 0, %v193
    %v195 = vrot.slane %v87, %v194
    %v196 = vlaneseq
    %v197 = vshrl.u32 %v196, 7
    %v198 = vsub.s32 1, %v197
    %v199 = vrot.slane %v87, %v198
    %v202 = vmul.f32 %v190, %v195
    %v203 = vmul.f32 %v189, %v199
    %s204 = sld [smem:[#allocation5 + $0x1]]
    %v205 = vstv %s204
    %v206 = vmul.f32 %v205, %v202
    %v207 = vmul.f32 %v205, %v203
    %v208 = vadd.f32 %v170, %v206
    %v209 = vadd.f32 %v171, %v207
    %s210 = sld [smem:[#allocation5 + $0x1c]]
    %v211 = vstv %s210
    %v212 = vmul.f32 %v211, %v202
    %v213 = vmul.f32 %v211, %v203
    %v214 = vadd.f32 %v176, %v212
    %v215 = vadd.f32 %v177, %v213
    %s216 = sld [smem:[#allocation5 + $0x37]]
    %v217 = vstv %s216
    %v218 = vmul.f32 %v217, %v202
    %v219 = vmul.f32 %v217, %v203
    %v220 = vadd.f32 %v182, %v218
    %v221 = vadd.f32 %v183, %v219
    %222 = vrot.lane.b32.xlu0 %v134, 15
    %v223 = vpop.permute.xlu0 %222
    %224 = vrot.lane.b32.xlu0 %v141, 15
    %v225 = vpop.permute.xlu0 %224
    %vm226 = vcmp.lt.s32.totalorder %v149, 15
    %v227 = vsel %vm226, %v223, %v225
    %v228 = vsel %vm226, %v225, %v223
    %v230 = vlaneseq
    %v231 = vshrl.u32 %v230, 7
    %v232 = vsub.s32 0, %v231
    %v233 = vrot.slane %v89, %v232
    %v234 = vlaneseq
    %v235 = vshrl.u32 %v234, 7
    %v236 = vsub.s32 1, %v235
    %v237 = vrot.slane %v89, %v236
    %v240 = vmul.f32 %v228, %v233
    %v241 = vmul.f32 %v227, %v237
    %s242 = sld [smem:[#allocation5 + $0x2]]
    %v243 = vstv %s242
    %v244 = vmul.f32 %v243, %v240
    %v245 = vmul.f32 %v243, %v241
    %v246 = vadd.f32 %v208, %v244
    %v247 = vadd.f32 %v209, %v245
    %s248 = sld [smem:[#allocation5 + $0x1d]]
    %v249 = vstv %s248
    %v250 = vmul.f32 %v249, %v240
    %v251 = vmul.f32 %v249, %v241
    %v252 = vadd.f32 %v214, %v250
    %v253 = vadd.f32 %v215, %v251
    %s254 = sld [smem:[#allocation5 + $0x38]]
    %v255 = vstv %s254
    %v256 = vmul.f32 %v255, %v240
    %v257 = vmul.f32 %v255, %v241
    %v258 = vadd.f32 %v220, %v256
    %v259 = vadd.f32 %v221, %v257
    %260 = vrot.lane.b32.xlu0 %v134, 1
    %v261 = vpop.permute.xlu0 %260
    %262 = vrot.lane.b32.xlu0 %v141, 1
    %v263 = vpop.permute.xlu0 %262
    %vm264 = vcmp.lt.s32.totalorder %v149, 1
    %v265 = vsel %vm264, %v261, %v263
    %v266 = vsel %vm264, %v263, %v261
    %v268 = vlaneseq
    %v269 = vshrl.u32 %v268, 7
    %v270 = vsub.s32 0, %v269
    %v271 = vrot.slane %v91, %v270
    %v272 = vlaneseq
    %v273 = vshrl.u32 %v272, 7
    %v274 = vsub.s32 1, %v273
    %v275 = vrot.slane %v91, %v274
    %v278 = vmul.f32 %v266, %v271
    %v279 = vmul.f32 %v265, %v275
    %s280 = sld [smem:[#allocation5 + $0x3]]
    %v281 = vstv %s280
    %v282 = vmul.f32 %v281, %v278
    %v283 = vmul.f32 %v281, %v279
    %v284 = vadd.f32 %v246, %v282
    %v285 = vadd.f32 %v247, %v283
    %s286 = sld [smem:[#allocation5 + $0x1e]]
    %v287 = vstv %s286
    %v288 = vmul.f32 %v287, %v278
    %v289 = vmul.f32 %v287, %v279
    %v290 = vadd.f32 %v252, %v288
    %v291 = vadd.f32 %v253, %v289
    %s292 = sld [smem:[#allocation5 + $0x39]]
    %v293 = vstv %s292
    %v294 = vmul.f32 %v293, %v278
    %v295 = vmul.f32 %v293, %v279
    %v296 = vadd.f32 %v258, %v294
    %v297 = vadd.f32 %v259, %v295
    %s298 = sld [smem:[#allocation5 + $0x4]]
    %v299 = vstv %s298
    %v300 = vmul.f32 %v299, %v100
    %v301 = vmul.f32 %v299, %v102
    %v304 = vcombine.low %v300, %v301
    %v306 = vunpack.c.l.s4 1966171168
    %v307 = vunpack.c.0.s8 %v306
    %v308 = vlaneseq
    %v309 = vshrl.u32 %v308, 7
    %v310 = vsub.s32 %v307, %v309
    %v311 = vrot.slane %v304, %v310
    %v312 = vcombine.high %v311, %v311
    %v314 = vunpack.c.l.s4 1966171168
    %v315 = vunpack.c.0.s8 %v314
    %v316 = vlaneseq
    %v317 = vshrl.u32 %v316, 7
    %v318 = vsub.s32 %v315, %v317
    %v319 = vrot.slane %v311, %v318
    %v321 = vunpack.c.l.s4 1966171168
    %v322 = vunpack.c.0.s8 %v321
    %v323 = vlaneseq
    %v324 = vshrl.u32 %v323, 7
    %v325 = vsub.s32 %v322, %v324
    %v326 = vrot.slane %v312, %v325
    %v329 = vadd.f32 %v284, %v319
    %v330 = vadd.f32 %v285, %v326
    %s331 = sld [smem:[#allocation5 + $0x1f]]
    %v332 = vstv %s331
    %v333 = vmul.f32 %v332, %v100
    %v334 = vmul.f32 %v332, %v102
    %v337 = vcombine.low %v333, %v334
    %v339 = vunpack.c.l.s4 1966171168
    %v340 = vunpack.c.0.s8 %v339
    %v341 = vlaneseq
    %v342 = vshrl.u32 %v341, 7
    %v343 = vsub.s32 %v340, %v342
    %v344 = vrot.slane %v337, %v343
    %v345 = vcombine.high %v344, %v344
    %v347 = vunpack.c.l.s4 1966171168
    %v348 = vunpack.c.0.s8 %v347
    %v349 = vlaneseq
    %v350 = vshrl.u32 %v349, 7
    %v351 = vsub.s32 %v348, %v350
    %v352 = vrot.slane %v344, %v351
    %v354 = vunpack.c.l.s4 1966171168
    %v355 = vunpack.c.0.s8 %v354
    %v356 = vlaneseq
    %v357 = vshrl.u32 %v356, 7
    %v358 = vsub.s32 %v355, %v357
    %v359 = vrot.slane %v345, %v358
    %v362 = vadd.f32 %v290, %v352
    %v363 = vadd.f32 %v291, %v359
    %s364 = sld [smem:[#allocation5 + $0x3a]]
    %v365 = vstv %s364
    %v366 = vmul.f32 %v365, %v100
    %v367 = vmul.f32 %v365, %v102
    %v370 = vcombine.low %v366, %v367
    %v372 = vunpack.c.l.s4 1966171168
    %v373 = vunpack.c.0.s8 %v372
    %v374 = vlaneseq
    %v375 = vshrl.u32 %v374, 7
    %v376 = vsub.s32 %v373, %v375
    %v377 = vrot.slane %v370, %v376
    %v378 = vcombine.high %v377, %v377
    %v380 = vunpack.c.l.s4 1966171168
    %v381 = vunpack.c.0.s8 %v380
    %v382 = vlaneseq
    %v383 = vshrl.u32 %v382, 7
    %v384 = vsub.s32 %v381, %v383
    %v385 = vrot.slane %v377, %v384
    %v387 = vunpack.c.l.s4 1966171168
    %v388 = vunpack.c.0.s8 %v387
    %v389 = vlaneseq
    %v390 = vshrl.u32 %v389, 7
    %v391 = vsub.s32 %v388, %v390
    %v392 = vrot.slane %v378, %v391
    %v395 = vadd.f32 %v296, %v385
    %v396 = vadd.f32 %v297, %v392
    %397 = vrot.lane.b32.xlu0 %v134, 127
    %v398 = vpop.permute.xlu0 %397
    %399 = vrot.lane.b32.xlu0 %v141, 127
    %v400 = vpop.permute.xlu0 %399
    %vm401 = vcmp.lt.s32.totalorder %v149, 127
    %v402 = vsel %vm401, %v398, %v400
    %v403 = vsel %vm401, %v400, %v398
    %v405 = vlaneseq
    %v406 = vshrl.u32 %v405, 7
    %v407 = vsub.s32 0, %v406
    %v408 = vrot.slane %v93, %v407
    %v409 = vlaneseq
    %v410 = vshrl.u32 %v409, 7
    %v411 = vsub.s32 1, %v410
    %v412 = vrot.slane %v93, %v411
    %v415 = vmul.f32 %v402, %v408
    %v416 = vmul.f32 %v403, %v412
    %s417 = sld [smem:[#allocation5 + $0x5]]
    %v418 = vstv %s417
    %v419 = vmul.f32 %v418, %v415
    %v420 = vmul.f32 %v418, %v416
    %v421 = vadd.f32 %v329, %v419
    %v422 = vadd.f32 %v330, %v420
    %s423 = sld [smem:[#allocation5 + $0x20]]
    %v424 = vstv %s423
    %v425 = vmul.f32 %v424, %v415
    %v426 = vmul.f32 %v424, %v416
    %v427 = vadd.f32 %v362, %v425
    %v428 = vadd.f32 %v363, %v426
    %s429 = sld [smem:[#allocation5 + $0x3b]]
    %v430 = vstv %s429
    %v431 = vmul.f32 %v430, %v415
    %v432 = vmul.f32 %v430, %v416
    %v433 = vadd.f32 %v395, %v431
    %v434 = vadd.f32 %v396, %v432
    %435 = vrot.lane.b32.xlu0 %v134, 113
    %v436 = vpop.permute.xlu0 %435
    %437 = vrot.lane.b32.xlu0 %v141, 113
    %v438 = vpop.permute.xlu0 %437
    %vm439 = vcmp.lt.s32.totalorder %v149, 113
    %v440 = vsel %vm439, %v436, %v438
    %v441 = vsel %vm439, %v438, %v436
    %v443 = vlaneseq
    %v444 = vshrl.u32 %v443, 7
    %v445 = vsub.s32 0, %v444
    %v446 = vrot.slane %v95, %v445
    %v447 = vlaneseq
    %v448 = vshrl.u32 %v447, 7
    %v449 = vsub.s32 1, %v448
    %v450 = vrot.slane %v95, %v449
    %v453 = vmul.f32 %v440, %v446
    %v454 = vmul.f32 %v441, %v450
    %s455 = sld [smem:[#allocation5 + $0x6]]
    %v456 = vstv %s455
    %v457 = vmul.f32 %v456, %v453
    %v458 = vmul.f32 %v456, %v454
    %v459 = vadd.f32 %v421, %v457
    %v460 = vadd.f32 %v422, %v458
    %s461 = sld [smem:[#allocation5 + $0x21]]
    %v462 = vstv %s461
    %v463 = vmul.f32 %v462, %v453
    %v464 = vmul.f32 %v462, %v454
    %v465 = vadd.f32 %v427, %v463
    %v466 = vadd.f32 %v428, %v464
    %s467 = sld [smem:[#allocation5 + $0x3c]]
    %v468 = vstv %s467
    %v469 = vmul.f32 %v468, %v453
    %v470 = vmul.f32 %v468, %v454
    %v471 = vadd.f32 %v433, %v469
    %v472 = vadd.f32 %v434, %v470
    %473 = vrot.lane.b32.xlu0 %v134, 112
    %v474 = vpop.permute.xlu0 %473
    %475 = vrot.lane.b32.xlu0 %v141, 112
    %v476 = vpop.permute.xlu0 %475
    %vm477 = vcmp.lt.s32.totalorder %v149, 112
    %v478 = vsel %vm477, %v474, %v476
    %v479 = vsel %vm477, %v476, %v474
    %v481 = vlaneseq
    %v482 = vshrl.u32 %v481, 7
    %v483 = vsub.s32 0, %v482
    %v484 = vrot.slane %v97, %v483
    %v485 = vlaneseq
    %v486 = vshrl.u32 %v485, 7
    %v487 = vsub.s32 1, %v486
    %v488 = vrot.slane %v97, %v487
    %v491 = vmul.f32 %v478, %v484
    %v492 = vmul.f32 %v479, %v488
    %s493 = sld [smem:[#allocation5 + $0x7]]
    %v494 = vstv %s493
    %v495 = vmul.f32 %v494, %v491
    %v496 = vmul.f32 %v494, %v492
    %v497 = vadd.f32 %v459, %v495
    %v498 = vadd.f32 %v460, %v496
    %s499 = sld [smem:[#allocation5 + $0x22]]
    %v500 = vstv %s499
    %v501 = vmul.f32 %v500, %v491
    %v502 = vmul.f32 %v500, %v492
    %v503 = vadd.f32 %v465, %v501
    %v504 = vadd.f32 %v466, %v502
    %s505 = sld [smem:[#allocation5 + $0x3d]]
    %v506 = vstv %s505
    %v507 = vmul.f32 %v506, %v491
    %v508 = vmul.f32 %v506, %v492
    %v509 = vadd.f32 %v471, %v507
    %v510 = vadd.f32 %v472, %v508
    %511 = vrot.lane.b32.xlu0 %v134, 111
    %v512 = vpop.permute.xlu0 %511
    %513 = vrot.lane.b32.xlu0 %v141, 111
    %v514 = vpop.permute.xlu0 %513
    %vm515 = vcmp.lt.s32.totalorder %v149, 111
    %v516 = vsel %vm515, %v512, %v514
    %v517 = vsel %vm515, %v514, %v512
    %v519 = vlaneseq
    %v520 = vshrl.u32 %v519, 7
    %v521 = vsub.s32 0, %v520
    %v522 = vrot.slane %v99, %v521
    %v523 = vlaneseq
    %v524 = vshrl.u32 %v523, 7
    %v525 = vsub.s32 1, %v524
    %v526 = vrot.slane %v99, %v525
    %v529 = vmul.f32 %v516, %v522
    %v530 = vmul.f32 %v517, %v526
    %s531 = sld [smem:[#allocation5 + $0x8]]
    %v532 = vstv %s531
    %v533 = vmul.f32 %v532, %v529
    %v534 = vmul.f32 %v532, %v530
    %v535 = vadd.f32 %v497, %v533
    %v536 = vadd.f32 %v498, %v534
    %s537 = sld [smem:[#allocation5 + $0x23]]
    %v538 = vstv %s537
    %v539 = vmul.f32 %v538, %v529
    %v540 = vmul.f32 %v538, %v530
    %v541 = vadd.f32 %v503, %v539
    %v542 = vadd.f32 %v504, %v540
    %s543 = sld [smem:[#allocation5 + $0x3e]]
    %v544 = vstv %s543
    %v545 = vmul.f32 %v544, %v529
    %v546 = vmul.f32 %v544, %v530
    %v547 = vadd.f32 %v509, %v545
    %v548 = vadd.f32 %v510, %v546
    %v551 = vcombine.low %v104, %v106
    %v553 = vunpack.c.l.s4 1966171168
    %v554 = vunpack.c.0.s8 %v553
    %v555 = vlaneseq
    %v556 = vshrl.u32 %v555, 7
    %v557 = vsub.s32 %v554, %v556
    %v558 = vrot.slane %v551, %v557
    %v559 = vcombine.high %v558, %v558
    %v561 = vunpack.c.l.s4 1966171168
    %v562 = vunpack.c.0.s8 %v561
    %v563 = vlaneseq
    %v564 = vshrl.u32 %v563, 7
    %v565 = vsub.s32 %v562, %v564
    %v566 = vrot.slane %v558, %v565
    %v568 = vunpack.c.l.s4 1966171168
    %v569 = vunpack.c.0.s8 %v568
    %v570 = vlaneseq
    %v571 = vshrl.u32 %v570, 7
    %v572 = vsub.s32 %v569, %v571
    %v573 = vrot.slane %v559, %v572
    %576 = vrot.lane.b32.xlu0 %v566, 17
    %v577 = vpop.permute.xlu0 %576
    %578 = vrot.lane.b32.xlu0 %v573, 17
    %v579 = vpop.permute.xlu0 %578
    %v580 = vsel %vm150, %v577, %v579
    %v581 = vsel %vm150, %v579, %v577
    %v582 = vmul.f32 %v581, %v157
    %v583 = vmul.f32 %v580, %v161
    %s584 = sld [smem:[#allocation5 + $0x9]]
    %v585 = vstv %s584
    %v586 = vmul.f32 %v585, %v582
    %v587 = vmul.f32 %v585, %v583
    %v588 = vadd.f32 %v535, %v586
    %v589 = vadd.f32 %v536, %v587
    %s590 = sld [smem:[#allocation5 + $0x24]]
    %v591 = vstv %s590
    %v592 = vmul.f32 %v591, %v582
    %v593 = vmul.f32 %v591, %v583
    %v594 = vadd.f32 %v541, %v592
    %v595 = vadd.f32 %v542, %v593
    %s596 = sld [smem:[#allocation5 + $0x3f]]
    %v597 = vstv %s596
    %v598 = vmul.f32 %v597, %v582
    %v599 = vmul.f32 %v597, %v583
    %v600 = vadd.f32 %v547, %v598
    %v601 = vadd.f32 %v548, %v599
    %602 = vrot.lane.b32.xlu0 %v566, 16
    %v603 = vpop.permute.xlu0 %602
    %604 = vrot.lane.b32.xlu0 %v573, 16
    %v605 = vpop.permute.xlu0 %604
    %v606 = vsel %vm188, %v603, %v605
    %v607 = vsel %vm188, %v605, %v603
    %v608 = vmul.f32 %v607, %v195
    %v609 = vmul.f32 %v606, %v199
    %s610 = sld [smem:[#allocation5 + $0xa]]
    %v611 = vstv %s610
    %v612 = vmul.f32 %v611, %v608
    %v613 = vmul.f32 %v611, %v609
    %v614 = vadd.f32 %v588, %v612
    %v615 = vadd.f32 %v589, %v613
    %s616 = sld [smem:[#allocation5 + $0x25]]
    %v617 = vstv %s616
    %v618 = vmul.f32 %v617, %v608
    %v619 = vmul.f32 %v617, %v609
    %v620 = vadd.f32 %v594, %v618
    %v621 = vadd.f32 %v595, %v619
    %s622 = sld [smem:[#allocation5 + $0x40]]
    %v623 = vstv %s622
    %v624 = vmul.f32 %v623, %v608
    %v625 = vmul.f32 %v623, %v609
    %v626 = vadd.f32 %v600, %v624
    %v627 = vadd.f32 %v601, %v625
    %628 = vrot.lane.b32.xlu0 %v566, 15
    %v629 = vpop.permute.xlu0 %628
    %630 = vrot.lane.b32.xlu0 %v573, 15
    %v631 = vpop.permute.xlu0 %630
    %v632 = vsel %vm226, %v629, %v631
    %v633 = vsel %vm226, %v631, %v629
    %v634 = vmul.f32 %v633, %v233
    %v635 = vmul.f32 %v632, %v237
    %s636 = sld [smem:[#allocation5 + $0xb]]
    %v637 = vstv %s636
    %v638 = vmul.f32 %v637, %v634
    %v639 = vmul.f32 %v637, %v635
    %v640 = vadd.f32 %v614, %v638
    %v641 = vadd.f32 %v615, %v639
    %s642 = sld [smem:[#allocation5 + $0x26]]
    %v643 = vstv %s642
    %v644 = vmul.f32 %v643, %v634
    %v645 = vmul.f32 %v643, %v635
    %v646 = vadd.f32 %v620, %v644
    %v647 = vadd.f32 %v621, %v645
    %s648 = sld [smem:[#allocation5 + $0x41]]
    %v649 = vstv %s648
    %v650 = vmul.f32 %v649, %v634
    %v651 = vmul.f32 %v649, %v635
    %v652 = vadd.f32 %v626, %v650
    %v653 = vadd.f32 %v627, %v651
    %654 = vrot.lane.b32.xlu0 %v566, 1
    %v655 = vpop.permute.xlu0 %654
    %656 = vrot.lane.b32.xlu0 %v573, 1
    %v657 = vpop.permute.xlu0 %656
    %v658 = vsel %vm264, %v655, %v657
    %v659 = vsel %vm264, %v657, %v655
    %v660 = vmul.f32 %v659, %v271
    %v661 = vmul.f32 %v658, %v275
    %s662 = sld [smem:[#allocation5 + $0xc]]
    %v663 = vstv %s662
    %v664 = vmul.f32 %v663, %v660
    %v665 = vmul.f32 %v663, %v661
    %v666 = vadd.f32 %v640, %v664
    %v667 = vadd.f32 %v641, %v665
    %s668 = sld [smem:[#allocation5 + $0x27]]
    %v669 = vstv %s668
    %v670 = vmul.f32 %v669, %v660
    %v671 = vmul.f32 %v669, %v661
    %v672 = vadd.f32 %v646, %v670
    %v673 = vadd.f32 %v647, %v671
    %s674 = sld [smem:[#allocation5 + $0x42]]
    %v675 = vstv %s674
    %v676 = vmul.f32 %v675, %v660
    %v677 = vmul.f32 %v675, %v661
    %v678 = vadd.f32 %v652, %v676
    %v679 = vadd.f32 %v653, %v677
    %s680 = sld [smem:[#allocation5 + $0xd]]
    %v681 = vstv %s680
    %v682 = vmul.f32 %v681, %v104
    %v683 = vmul.f32 %v681, %v106
    %v686 = vcombine.low %v682, %v683
    %v688 = vunpack.c.l.s4 1966171168
    %v689 = vunpack.c.0.s8 %v688
    %v690 = vlaneseq
    %v691 = vshrl.u32 %v690, 7
    %v692 = vsub.s32 %v689, %v691
    %v693 = vrot.slane %v686, %v692
    %v694 = vcombine.high %v693, %v693
    %v696 = vunpack.c.l.s4 1966171168
    %v697 = vunpack.c.0.s8 %v696
    %v698 = vlaneseq
    %v699 = vshrl.u32 %v698, 7
    %v700 = vsub.s32 %v697, %v699
    %v701 = vrot.slane %v693, %v700
    %v703 = vunpack.c.l.s4 1966171168
    %v704 = vunpack.c.0.s8 %v703
    %v705 = vlaneseq
    %v706 = vshrl.u32 %v705, 7
    %v707 = vsub.s32 %v704, %v706
    %v708 = vrot.slane %v694, %v707
    %v711 = vadd.f32 %v666, %v701
    %v712 = vadd.f32 %v667, %v708
    %s713 = sld [smem:[#allocation5 + $0x28]]
    %v714 = vstv %s713
    %v715 = vmul.f32 %v714, %v104
    %v716 = vmul.f32 %v714, %v106
    %v719 = vcombine.low %v715, %v716
    %v721 = vunpack.c.l.s4 1966171168
    %v722 = vunpack.c.0.s8 %v721
    %v723 = vlaneseq
    %v724 = vshrl.u32 %v723, 7
    %v725 = vsub.s32 %v722, %v724
    %v726 = vrot.slane %v719, %v725
    %v727 = vcombine.high %v726, %v726
    %v729 = vunpack.c.l.s4 1966171168
    %v730 = vunpack.c.0.s8 %v729
    %v731 = vlaneseq
    %v732 = vshrl.u32 %v731, 7
    %v733 = vsub.s32 %v730, %v732
    %v734 = vrot.slane %v726, %v733
    %v736 = vunpack.c.l.s4 1966171168
    %v737 = vunpack.c.0.s8 %v736
    %v738 = vlaneseq
    %v739 = vshrl.u32 %v738, 7
    %v740 = vsub.s32 %v737, %v739
    %v741 = vrot.slane %v727, %v740
    %v744 = vadd.f32 %v672, %v734
    %v745 = vadd.f32 %v673, %v741
    %s746 = sld [smem:[#allocation5 + $0x43]]
    %v747 = vstv %s746
    %v748 = vmul.f32 %v747, %v104
    %v749 = vmul.f32 %v747, %v106
    %v752 = vcombine.low %v748, %v749
    %v754 = vunpack.c.l.s4 1966171168
    %v755 = vunpack.c.0.s8 %v754
    %v756 = vlaneseq
    %v757 = vshrl.u32 %v756, 7
    %v758 = vsub.s32 %v755, %v757
    %v759 = vrot.slane %v752, %v758
    %v760 = vcombine.high %v759, %v759
    %v762 = vunpack.c.l.s4 1966171168
    %v763 = vunpack.c.0.s8 %v762
    %v764 = vlaneseq
    %v765 = vshrl.u32 %v764, 7
    %v766 = vsub.s32 %v763, %v765
    %v767 = vrot.slane %v759, %v766
    %v769 = vunpack.c.l.s4 1966171168
    %v770 = vunpack.c.0.s8 %v769
    %v771 = vlaneseq
    %v772 = vshrl.u32 %v771, 7
    %v773 = vsub.s32 %v770, %v772
    %v774 = vrot.slane %v760, %v773
    %v777 = vadd.f32 %v678, %v767
    %v778 = vadd.f32 %v679, %v774
    %779 = vrot.lane.b32.xlu0 %v566, 127
    %v780 = vpop.permute.xlu0 %779
    %781 = vrot.lane.b32.xlu0 %v573, 127
    %v782 = vpop.permute.xlu0 %781
    %v783 = vsel %vm401, %v780, %v782
    %v784 = vsel %vm401, %v782, %v780
    %v785 = vmul.f32 %v783, %v408
    %v786 = vmul.f32 %v784, %v412
    %s787 = sld [smem:[#allocation5 + $0xe]]
    %v788 = vstv %s787
    %v789 = vmul.f32 %v788, %v785
    %v790 = vmul.f32 %v788, %v786
    %v791 = vadd.f32 %v711, %v789
    %v792 = vadd.f32 %v712, %v790
    %s793 = sld [smem:[#allocation5 + $0x29]]
    %v794 = vstv %s793
    %v795 = vmul.f32 %v794, %v785
    %v796 = vmul.f32 %v794, %v786
    %v797 = vadd.f32 %v744, %v795
    %v798 = vadd.f32 %v745, %v796
    %s799 = sld [smem:[#allocation5 + $0x44]]
    %v800 = vstv %s799
    %v801 = vmul.f32 %v800, %v785
    %v802 = vmul.f32 %v800, %v786
    %v803 = vadd.f32 %v777, %v801
    %v804 = vadd.f32 %v778, %v802
    %805 = vrot.lane.b32.xlu0 %v566, 113
    %v806 = vpop.permute.xlu0 %805
    %807 = vrot.lane.b32.xlu0 %v573, 113
    %v808 = vpop.permute.xlu0 %807
    %v809 = vsel %vm439, %v806, %v808
    %v810 = vsel %vm439, %v808, %v806
    %v811 = vmul.f32 %v809, %v446
    %v812 = vmul.f32 %v810, %v450
    %s813 = sld [smem:[#allocation5 + $0xf]]
    %v814 = vstv %s813
    %v815 = vmul.f32 %v814, %v811
    %v816 = vmul.f32 %v814, %v812
    %v817 = vadd.f32 %v791, %v815
    %v818 = vadd.f32 %v792, %v816
    %s819 = sld [smem:[#allocation5 + $0x2a]]
    %v820 = vstv %s819
    %v821 = vmul.f32 %v820, %v811
    %v822 = vmul.f32 %v820, %v812
    %v823 = vadd.f32 %v797, %v821
    %v824 = vadd.f32 %v798, %v822
    %s825 = sld [smem:[#allocation5 + $0x45]]
    %v826 = vstv %s825
    %v827 = vmul.f32 %v826, %v811
    %v828 = vmul.f32 %v826, %v812
    %v829 = vadd.f32 %v803, %v827
    %v830 = vadd.f32 %v804, %v828
    %831 = vrot.lane.b32.xlu0 %v566, 112
    %v832 = vpop.permute.xlu0 %831
    %833 = vrot.lane.b32.xlu0 %v573, 112
    %v834 = vpop.permute.xlu0 %833
    %v835 = vsel %vm477, %v832, %v834
    %v836 = vsel %vm477, %v834, %v832
    %v837 = vmul.f32 %v835, %v484
    %v838 = vmul.f32 %v836, %v488
    %s839 = sld [smem:[#allocation5 + $0x10]]
    %v840 = vstv %s839
    %v841 = vmul.f32 %v840, %v837
    %v842 = vmul.f32 %v840, %v838
    %v843 = vadd.f32 %v817, %v841
    %v844 = vadd.f32 %v818, %v842
    %s845 = sld [smem:[#allocation5 + $0x2b]]
    %v846 = vstv %s845
    %v847 = vmul.f32 %v846, %v837
    %v848 = vmul.f32 %v846, %v838
    %v849 = vadd.f32 %v823, %v847
    %v850 = vadd.f32 %v824, %v848
    %s851 = sld [smem:[#allocation5 + $0x46]]
    %v852 = vstv %s851
    %v853 = vmul.f32 %v852, %v837
    %v854 = vmul.f32 %v852, %v838
    %v855 = vadd.f32 %v829, %v853
    %v856 = vadd.f32 %v830, %v854
    %857 = vrot.lane.b32.xlu0 %v566, 111
    %v858 = vpop.permute.xlu0 %857
    %859 = vrot.lane.b32.xlu0 %v573, 111
    %v860 = vpop.permute.xlu0 %859
    %v861 = vsel %vm515, %v858, %v860
    %v862 = vsel %vm515, %v860, %v858
    %v863 = vmul.f32 %v861, %v522
    %v864 = vmul.f32 %v862, %v526
    %s865 = sld [smem:[#allocation5 + $0x11]]
    %v866 = vstv %s865
    %v867 = vmul.f32 %v866, %v863
    %v868 = vmul.f32 %v866, %v864
    %v869 = vadd.f32 %v843, %v867
    %v870 = vadd.f32 %v844, %v868
    %s871 = sld [smem:[#allocation5 + $0x2c]]
    %v872 = vstv %s871
    %v873 = vmul.f32 %v872, %v863
    %v874 = vmul.f32 %v872, %v864
    %v875 = vadd.f32 %v849, %v873
    %v876 = vadd.f32 %v850, %v874
    %s877 = sld [smem:[#allocation5 + $0x47]]
    %v878 = vstv %s877
    %v879 = vmul.f32 %v878, %v863
    %v880 = vmul.f32 %v878, %v864
    %v881 = vadd.f32 %v855, %v879
    %v882 = vadd.f32 %v856, %v880
    %v885 = vcombine.low %v108, %v110
    %v887 = vunpack.c.l.s4 1966171168
    %v888 = vunpack.c.0.s8 %v887
    %v889 = vlaneseq
    %v890 = vshrl.u32 %v889, 7
    %v891 = vsub.s32 %v888, %v890
    %v892 = vrot.slane %v885, %v891
    %v893 = vcombine.high %v892, %v892
    %v895 = vunpack.c.l.s4 1966171168
    %v896 = vunpack.c.0.s8 %v895
    %v897 = vlaneseq
    %v898 = vshrl.u32 %v897, 7
    %v899 = vsub.s32 %v896, %v898
    %v900 = vrot.slane %v892, %v899
    %v902 = vunpack.c.l.s4 1966171168
    %v903 = vunpack.c.0.s8 %v902
    %v904 = vlaneseq
    %v905 = vshrl.u32 %v904, 7
    %v906 = vsub.s32 %v903, %v905
    %v907 = vrot.slane %v893, %v906
    %910 = vrot.lane.b32.xlu0 %v900, 17
    %v911 = vpop.permute.xlu0 %910
    %912 = vrot.lane.b32.xlu0 %v907, 17
    %v913 = vpop.permute.xlu0 %912
    %v914 = vsel %vm150, %v911, %v913
    %v915 = vsel %vm150, %v913, %v911
    %v916 = vmul.f32 %v915, %v157
    %v917 = vmul.f32 %v914, %v161
    %s918 = sld [smem:[#allocation5 + $0x12]]
    %v919 = vstv %s918
    %v920 = vmul.f32 %v919, %v916
    %v921 = vmul.f32 %v919, %v917
    %v922 = vadd.f32 %v869, %v920
    %v923 = vadd.f32 %v870, %v921
    %s924 = sld [smem:[#allocation5 + $0x2d]]
    %v925 = vstv %s924
    %v926 = vmul.f32 %v925, %v916
    %v927 = vmul.f32 %v925, %v917
    %v928 = vadd.f32 %v875, %v926
    %v929 = vadd.f32 %v876, %v927
    %s930 = sld [smem:[#allocation5 + $0x48]]
    %v931 = vstv %s930
    %v932 = vmul.f32 %v931, %v916
    %v933 = vmul.f32 %v931, %v917
    %v934 = vadd.f32 %v881, %v932
    %v935 = vadd.f32 %v882, %v933
    %936 = vrot.lane.b32.xlu0 %v900, 16
    %v937 = vpop.permute.xlu0 %936
    %938 = vrot.lane.b32.xlu0 %v907, 16
    %v939 = vpop.permute.xlu0 %938
    %v940 = vsel %vm188, %v937, %v939
    %v941 = vsel %vm188, %v939, %v937
    %v942 = vmul.f32 %v941, %v195
    %v943 = vmul.f32 %v940, %v199
    %s944 = sld [smem:[#allocation5 + $0x13]]
    %v945 = vstv %s944
    %v946 = vmul.f32 %v945, %v942
    %v947 = vmul.f32 %v945, %v943
    %v948 = vadd.f32 %v922, %v946
    %v949 = vadd.f32 %v923, %v947
    %s950 = sld [smem:[#allocation5 + $0x2e]]
    %v951 = vstv %s950
    %v952 = vmul.f32 %v951, %v942
    %v953 = vmul.f32 %v951, %v943
    %v954 = vadd.f32 %v928, %v952
    %v955 = vadd.f32 %v929, %v953
    %s956 = sld [smem:[#allocation5 + $0x49]]
    %v957 = vstv %s956
    %v958 = vmul.f32 %v957, %v942
    %v959 = vmul.f32 %v957, %v943
    %v960 = vadd.f32 %v934, %v958
    %v961 = vadd.f32 %v935, %v959
    %962 = vrot.lane.b32.xlu0 %v900, 15
    %v963 = vpop.permute.xlu0 %962
    %964 = vrot.lane.b32.xlu0 %v907, 15
    %v965 = vpop.permute.xlu0 %964
    %v966 = vsel %vm226, %v963, %v965
    %v967 = vsel %vm226, %v965, %v963
    %v968 = vmul.f32 %v967, %v233
    %v969 = vmul.f32 %v966, %v237
    %s970 = sld [smem:[#allocation5 + $0x14]]
    %v971 = vstv %s970
    %v972 = vmul.f32 %v971, %v968
    %v973 = vmul.f32 %v971, %v969
    %v974 = vadd.f32 %v948, %v972
    %v975 = vadd.f32 %v949, %v973
    %s976 = sld [smem:[#allocation5 + $0x2f]]
    %v977 = vstv %s976
    %v978 = vmul.f32 %v977, %v968
    %v979 = vmul.f32 %v977, %v969
    %v980 = vadd.f32 %v954, %v978
    %v981 = vadd.f32 %v955, %v979
    %s982 = sld [smem:[#allocation5 + $0x4a]]
    %v983 = vstv %s982
    %v984 = vmul.f32 %v983, %v968
    %v985 = vmul.f32 %v983, %v969
    %v986 = vadd.f32 %v960, %v984
    %v987 = vadd.f32 %v961, %v985
    %988 = vrot.lane.b32.xlu0 %v900, 1
    %v989 = vpop.permute.xlu0 %988
    %990 = vrot.lane.b32.xlu0 %v907, 1
    %v991 = vpop.permute.xlu0 %990
    %v992 = vsel %vm264, %v989, %v991
    %v993 = vsel %vm264, %v991, %v989
    %v994 = vmul.f32 %v993, %v271
    %v995 = vmul.f32 %v992, %v275
    %s996 = sld [smem:[#allocation5 + $0x15]]
    %v997 = vstv %s996
    %v998 = vmul.f32 %v997, %v994
    %v999 = vmul.f32 %v997, %v995
    %v1000 = vadd.f32 %v974, %v998
    %v1001 = vadd.f32 %v975, %v999
    %s1002 = sld [smem:[#allocation5 + $0x30]]
    %v1003 = vstv %s1002
    %v1004 = vmul.f32 %v1003, %v994
    %v1005 = vmul.f32 %v1003, %v995
    %v1006 = vadd.f32 %v980, %v1004
    %v1007 = vadd.f32 %v981, %v1005
    %s1008 = sld [smem:[#allocation5 + $0x4b]]
    %v1009 = vstv %s1008
    %v1010 = vmul.f32 %v1009, %v994
    %v1011 = vmul.f32 %v1009, %v995
    %v1012 = vadd.f32 %v986, %v1010
    %v1013 = vadd.f32 %v987, %v1011
    %s1014 = sld [smem:[#allocation5 + $0x16]]
    %v1015 = vstv %s1014
    %v1016 = vmul.f32 %v1015, %v108
    %v1017 = vmul.f32 %v1015, %v110
    %v1020 = vcombine.low %v1016, %v1017
    %v1022 = vunpack.c.l.s4 1966171168
    %v1023 = vunpack.c.0.s8 %v1022
    %v1024 = vlaneseq
    %v1025 = vshrl.u32 %v1024, 7
    %v1026 = vsub.s32 %v1023, %v1025
    %v1027 = vrot.slane %v1020, %v1026
    %v1028 = vcombine.high %v1027, %v1027
    %v1030 = vunpack.c.l.s4 1966171168
    %v1031 = vunpack.c.0.s8 %v1030
    %v1032 = vlaneseq
    %v1033 = vshrl.u32 %v1032, 7
    %v1034 = vsub.s32 %v1031, %v1033
    %v1035 = vrot.slane %v1027, %v1034
    %v1037 = vunpack.c.l.s4 1966171168
    %v1038 = vunpack.c.0.s8 %v1037
    %v1039 = vlaneseq
    %v1040 = vshrl.u32 %v1039, 7
    %v1041 = vsub.s32 %v1038, %v1040
    %v1042 = vrot.slane %v1028, %v1041
    %v1045 = vadd.f32 %v1000, %v1035
    %v1046 = vadd.f32 %v1001, %v1042
    %s1047 = sld [smem:[#allocation5 + $0x31]]
    %v1048 = vstv %s1047
    %v1049 = vmul.f32 %v1048, %v108
    %v1050 = vmul.f32 %v1048, %v110
    %v1053 = vcombine.low %v1049, %v1050
    %v1055 = vunpack.c.l.s4 1966171168
    %v1056 = vunpack.c.0.s8 %v1055
    %v1057 = vlaneseq
    %v1058 = vshrl.u32 %v1057, 7
    %v1059 = vsub.s32 %v1056, %v1058
    %v1060 = vrot.slane %v1053, %v1059
    %v1061 = vcombine.high %v1060, %v1060
    %v1063 = vunpack.c.l.s4 1966171168
    %v1064 = vunpack.c.0.s8 %v1063
    %v1065 = vlaneseq
    %v1066 = vshrl.u32 %v1065, 7
    %v1067 = vsub.s32 %v1064, %v1066
    %v1068 = vrot.slane %v1060, %v1067
    %v1070 = vunpack.c.l.s4 1966171168
    %v1071 = vunpack.c.0.s8 %v1070
    %v1072 = vlaneseq
    %v1073 = vshrl.u32 %v1072, 7
    %v1074 = vsub.s32 %v1071, %v1073
    %v1075 = vrot.slane %v1061, %v1074
    %v1078 = vadd.f32 %v1006, %v1068
    %v1079 = vadd.f32 %v1007, %v1075
    %s1080 = sld [smem:[#allocation5 + $0x4c]]
    %v1081 = vstv %s1080
    %v1082 = vmul.f32 %v1081, %v108
    %v1083 = vmul.f32 %v1081, %v110
    %v1086 = vcombine.low %v1082, %v1083
    %v1088 = vunpack.c.l.s4 1966171168
    %v1089 = vunpack.c.0.s8 %v1088
    %v1090 = vlaneseq
    %v1091 = vshrl.u32 %v1090, 7
    %v1092 = vsub.s32 %v1089, %v1091
    %v1093 = vrot.slane %v1086, %v1092
    %v1094 = vcombine.high %v1093, %v1093
    %v1096 = vunpack.c.l.s4 1966171168
    %v1097 = vunpack.c.0.s8 %v1096
    %v1098 = vlaneseq
    %v1099 = vshrl.u32 %v1098, 7
    %v1100 = vsub.s32 %v1097, %v1099
    %v1101 = vrot.slane %v1093, %v1100
    %v1103 = vunpack.c.l.s4 1966171168
    %v1104 = vunpack.c.0.s8 %v1103
    %v1105 = vlaneseq
    %v1106 = vshrl.u32 %v1105, 7
    %v1107 = vsub.s32 %v1104, %v1106
    %v1108 = vrot.slane %v1094, %v1107
    %v1111 = vadd.f32 %v1012, %v1101
    %v1112 = vadd.f32 %v1013, %v1108
    %1113 = vrot.lane.b32.xlu0 %v900, 127
    %v1114 = vpop.permute.xlu0 %1113
    %1115 = vrot.lane.b32.xlu0 %v907, 127
    %v1116 = vpop.permute.xlu0 %1115
    %v1117 = vsel %vm401, %v1114, %v1116
    %v1118 = vsel %vm401, %v1116, %v1114
    %v1119 = vmul.f32 %v1117, %v408
    %v1120 = vmul.f32 %v1118, %v412
    %s1121 = sld [smem:[#allocation5 + $0x17]]
    %v1122 = vstv %s1121
    %v1123 = vmul.f32 %v1122, %v1119
    %v1124 = vmul.f32 %v1122, %v1120
    %v1125 = vadd.f32 %v1045, %v1123
    %v1126 = vadd.f32 %v1046, %v1124
    %s1127 = sld [smem:[#allocation5 + $0x32]]
    %v1128 = vstv %s1127
    %v1129 = vmul.f32 %v1128, %v1119
    %v1130 = vmul.f32 %v1128, %v1120
    %v1131 = vadd.f32 %v1078, %v1129
    %v1132 = vadd.f32 %v1079, %v1130
    %s1133 = sld [smem:[#allocation5 + $0x4d]]
    %v1134 = vstv %s1133
    %v1135 = vmul.f32 %v1134, %v1119
    %v1136 = vmul.f32 %v1134, %v1120
    %v1137 = vadd.f32 %v1111, %v1135
    %v1138 = vadd.f32 %v1112, %v1136
    %1139 = vrot.lane.b32.xlu0 %v900, 113
    %v1140 = vpop.permute.xlu0 %1139
    %1141 = vrot.lane.b32.xlu0 %v907, 113
    %v1142 = vpop.permute.xlu0 %1141
    %v1143 = vsel %vm439, %v1140, %v1142
    %v1144 = vsel %vm439, %v1142, %v1140
    %v1145 = vmul.f32 %v1143, %v446
    %v1146 = vmul.f32 %v1144, %v450
    %s1147 = sld [smem:[#allocation5 + $0x18]]
    %v1148 = vstv %s1147
    %v1149 = vmul.f32 %v1148, %v1145
    %v1150 = vmul.f32 %v1148, %v1146
    %v1151 = vadd.f32 %v1125, %v1149
    %v1152 = vadd.f32 %v1126, %v1150
    %s1153 = sld [smem:[#allocation5 + $0x33]]
    %v1154 = vstv %s1153
    %v1155 = vmul.f32 %v1154, %v1145
    %v1156 = vmul.f32 %v1154, %v1146
    %v1157 = vadd.f32 %v1131, %v1155
    %v1158 = vadd.f32 %v1132, %v1156
    %s1159 = sld [smem:[#allocation5 + $0x4e]]
    %v1160 = vstv %s1159
    %v1161 = vmul.f32 %v1160, %v1145
    %v1162 = vmul.f32 %v1160, %v1146
    %v1163 = vadd.f32 %v1137, %v1161
    %v1164 = vadd.f32 %v1138, %v1162
    %1165 = vrot.lane.b32.xlu0 %v900, 112
    %v1166 = vpop.permute.xlu0 %1165
    %1167 = vrot.lane.b32.xlu0 %v907, 112
    %v1168 = vpop.permute.xlu0 %1167
    %v1169 = vsel %vm477, %v1166, %v1168
    %v1170 = vsel %vm477, %v1168, %v1166
    %v1171 = vmul.f32 %v1169, %v484
    %v1172 = vmul.f32 %v1170, %v488
    %s1173 = sld [smem:[#allocation5 + $0x19]]
    %v1174 = vstv %s1173
    %v1175 = vmul.f32 %v1174, %v1171
    %v1176 = vmul.f32 %v1174, %v1172
    %v1177 = vadd.f32 %v1151, %v1175
    %v1178 = vadd.f32 %v1152, %v1176
    %s1179 = sld [smem:[#allocation5 + $0x34]]
    %v1180 = vstv %s1179
    %v1181 = vmul.f32 %v1180, %v1171
    %v1182 = vmul.f32 %v1180, %v1172
    %v1183 = vadd.f32 %v1157, %v1181
    %v1184 = vadd.f32 %v1158, %v1182
    %s1185 = sld [smem:[#allocation5 + $0x4f]]
    %v1186 = vstv %s1185
    %v1187 = vmul.f32 %v1186, %v1171
    %v1188 = vmul.f32 %v1186, %v1172
    %v1189 = vadd.f32 %v1163, %v1187
    %v1190 = vadd.f32 %v1164, %v1188
    %1191 = vrot.lane.b32.xlu0 %v900, 111
    %v1192 = vpop.permute.xlu0 %1191
    %1193 = vrot.lane.b32.xlu0 %v907, 111
    %v1194 = vpop.permute.xlu0 %1193
    %v1195 = vsel %vm515, %v1192, %v1194
    %v1196 = vsel %vm515, %v1194, %v1192
    %v1197 = vmul.f32 %v1195, %v522
    %v1198 = vmul.f32 %v1196, %v526
    %s1199 = sld [smem:[#allocation5 + $0x1a]]
    %v1200 = vstv %s1199
    %v1201 = vmul.f32 %v1200, %v1197
    %v1202 = vmul.f32 %v1200, %v1198
    %v1203 = vadd.f32 %v1177, %v1201
    %v1204 = vadd.f32 %v1178, %v1202
    %s1205 = sld [smem:[#allocation5 + $0x35]]
    %v1206 = vstv %s1205
    %v1207 = vmul.f32 %v1206, %v1197
    %v1208 = vmul.f32 %v1206, %v1198
    %v1209 = vadd.f32 %v1183, %v1207
    %v1210 = vadd.f32 %v1184, %v1208
    %s1211 = sld [smem:[#allocation5 + $0x50]]
    %v1212 = vstv %s1211
    %v1213 = vmul.f32 %v1212, %v1197
    %v1214 = vmul.f32 %v1212, %v1198
    %v1215 = vadd.f32 %v1189, %v1213
    %v1216 = vadd.f32 %v1190, %v1214
    %v1217 = vmax.f32 %v1203, 0.0
    %v1218 = vmax.f32 %v1204, 0.0
    %v1219 = vmax.f32 %v1209, 0.0
    %v1220 = vmax.f32 %v1210, 0.0
    %v1221 = vmax.f32 %v1215, 0.0
    %v1222 = vmax.f32 %v1216, 0.0
    %s1223 = sld [smem:[#allocation9]]
    %v1224 = vstv %s1223
    %s1225 = sld [smem:[#allocation9 + $0x1]]
    %v1226 = vstv %s1225
    %s1227 = sld [smem:[#allocation9 + $0x2]]
    %v1228 = vstv %s1227
    %1229 = vrot.lane.b32.xlu0 %v1217, 17
    %v1230 = vpop.permute.xlu0 %1229
    %1231 = vrot.lane.b32.xlu0 %v1218, 17
    %v1232 = vpop.permute.xlu0 %1231
    %v1233 = vsel %vm150, %v1230, %v1232
    %v1234 = vsel %vm150, %v1232, %v1230
    %v1235 = vmul.f32 %v1234, %v157
    %v1236 = vmul.f32 %v1233, %v161
    %s1237 = sld [smem:[#allocation8]]
    %v1238 = vstv %s1237
    %v1239 = vmul.f32 %v1238, %v1235
    %v1240 = vmul.f32 %v1238, %v1236
    %v1241 = vadd.f32 %v1224, %v1239
    %v1242 = vadd.f32 %v1224, %v1240
    %s1243 = sld [smem:[#allocation8 + $0x1b]]
    %v1244 = vstv %s1243
    %v1245 = vmul.f32 %v1244, %v1235
    %v1246 = vmul.f32 %v1244, %v1236
    %v1247 = vadd.f32 %v1226, %v1245
    %v1248 = vadd.f32 %v1226, %v1246
    %s1249 = sld [smem:[#allocation8 + $0x36]]
    %v1250 = vstv %s1249
    %v1251 = vmul.f32 %v1250, %v1235
    %v1252 = vmul.f32 %v1250, %v1236
    %v1253 = vadd.f32 %v1228, %v1251
    %v1254 = vadd.f32 %v1228, %v1252
    %1255 = vrot.lane.b32.xlu0 %v1217, 16
    %v1256 = vpop.permute.xlu0 %1255
    %1257 = vrot.lane.b32.xlu0 %v1218, 16
    %v1258 = vpop.permute.xlu0 %1257
    %v1259 = vsel %vm188, %v1256, %v1258
    %v1260 = vsel %vm188, %v1258, %v1256
    %v1261 = vmul.f32 %v1260, %v195
    %v1262 = vmul.f32 %v1259, %v199
    %s1263 = sld [smem:[#allocation8 + $0x1]]
    %v1264 = vstv %s1263
    %v1265 = vmul.f32 %v1264, %v1261
    %v1266 = vmul.f32 %v1264, %v1262
    %v1267 = vadd.f32 %v1241, %v1265
    %v1268 = vadd.f32 %v1242, %v1266
    %s1269 = sld [smem:[#allocation8 + $0x1c]]
    %v1270 = vstv %s1269
    %v1271 = vmul.f32 %v1270, %v1261
    %v1272 = vmul.f32 %v1270, %v1262
    %v1273 = vadd.f32 %v1247, %v1271
    %v1274 = vadd.f32 %v1248, %v1272
    %s1275 = sld [smem:[#allocation8 + $0x37]]
    %v1276 = vstv %s1275
    %v1277 = vmul.f32 %v1276, %v1261
    %v1278 = vmul.f32 %v1276, %v1262
    %v1279 = vadd.f32 %v1253, %v1277
    %v1280 = vadd.f32 %v1254, %v1278
    %1281 = vrot.lane.b32.xlu0 %v1217, 15
    %v1282 = vpop.permute.xlu0 %1281
    %1283 = vrot.lane.b32.xlu0 %v1218, 15
    %v1284 = vpop.permute.xlu0 %1283
    %v1285 = vsel %vm226, %v1282, %v1284
    %v1286 = vsel %vm226, %v1284, %v1282
    %v1287 = vmul.f32 %v1286, %v233
    %v1288 = vmul.f32 %v1285, %v237
    %s1289 = sld [smem:[#allocation8 + $0x2]]
    %v1290 = vstv %s1289
    %v1291 = vmul.f32 %v1290, %v1287
    %v1292 = vmul.f32 %v1290, %v1288
    %v1293 = vadd.f32 %v1267, %v1291
    %v1294 = vadd.f32 %v1268, %v1292
    %s1295 = sld [smem:[#allocation8 + $0x1d]]
    %v1296 = vstv %s1295
    %v1297 = vmul.f32 %v1296, %v1287
    %v1298 = vmul.f32 %v1296, %v1288
    %v1299 = vadd.f32 %v1273, %v1297
    %v1300 = vadd.f32 %v1274, %v1298
    %s1301 = sld [smem:[#allocation8 + $0x38]]
    %v1302 = vstv %s1301
    %v1303 = vmul.f32 %v1302, %v1287
    %v1304 = vmul.f32 %v1302, %v1288
    %v1305 = vadd.f32 %v1279, %v1303
    %v1306 = vadd.f32 %v1280, %v1304
    %1307 = vrot.lane.b32.xlu0 %v1217, 1
    %v1308 = vpop.permute.xlu0 %1307
    %1309 = vrot.lane.b32.xlu0 %v1218, 1
    %v1310 = vpop.permute.xlu0 %1309
    %v1311 = vsel %vm264, %v1308, %v1310
    %v1312 = vsel %vm264, %v1310, %v1308
    %v1313 = vmul.f32 %v1312, %v271
    %v1314 = vmul.f32 %v1311, %v275
    %s1315 = sld [smem:[#allocation8 + $0x3]]
    %v1316 = vstv %s1315
    %v1317 = vmul.f32 %v1316, %v1313
    %v1318 = vmul.f32 %v1316, %v1314
    %v1319 = vadd.f32 %v1293, %v1317
    %v1320 = vadd.f32 %v1294, %v1318
    %s1321 = sld [smem:[#allocation8 + $0x1e]]
    %v1322 = vstv %s1321
    %v1323 = vmul.f32 %v1322, %v1313
    %v1324 = vmul.f32 %v1322, %v1314
    %v1325 = vadd.f32 %v1299, %v1323
    %v1326 = vadd.f32 %v1300, %v1324
    %s1327 = sld [smem:[#allocation8 + $0x39]]
    %v1328 = vstv %s1327
    %v1329 = vmul.f32 %v1328, %v1313
    %v1330 = vmul.f32 %v1328, %v1314
    %v1331 = vadd.f32 %v1305, %v1329
    %v1332 = vadd.f32 %v1306, %v1330
    %s1333 = sld [smem:[#allocation8 + $0x4]]
    %v1334 = vstv %s1333
    %v1335 = vmul.f32 %v1334, %v1217
    %v1336 = vmul.f32 %v1334, %v1218
    %v1337 = vadd.f32 %v1319, %v1335
    %v1338 = vadd.f32 %v1320, %v1336
    %s1339 = sld [smem:[#allocation8 + $0x1f]]
    %v1340 = vstv %s1339
    %v1341 = vmul.f32 %v1340, %v1217
    %v1342 = vmul.f32 %v1340, %v1218
    %v1343 = vadd.f32 %v1325, %v1341
    %v1344 = vadd.f32 %v1326, %v1342
    %s1345 = sld [smem:[#allocation8 + $0x3a]]
    %v1346 = vstv %s1345
    %v1347 = vmul.f32 %v1346, %v1217
    %v1348 = vmul.f32 %v1346, %v1218
    %v1349 = vadd.f32 %v1331, %v1347
    %v1350 = vadd.f32 %v1332, %v1348
    %1351 = vrot.lane.b32.xlu0 %v1217, 127
    %v1352 = vpop.permute.xlu0 %1351
    %1353 = vrot.lane.b32.xlu0 %v1218, 127
    %v1354 = vpop.permute.xlu0 %1353
    %v1355 = vsel %vm401, %v1352, %v1354
    %v1356 = vsel %vm401, %v1354, %v1352
    %v1357 = vmul.f32 %v1355, %v408
    %v1358 = vmul.f32 %v1356, %v412
    %s1359 = sld [smem:[#allocation8 + $0x5]]
    %v1360 = vstv %s1359
    %v1361 = vmul.f32 %v1360, %v1357
    %v1362 = vmul.f32 %v1360, %v1358
    %v1363 = vadd.f32 %v1337, %v1361
    %v1364 = vadd.f32 %v1338, %v1362
    %s1365 = sld [smem:[#allocation8 + $0x20]]
    %v1366 = vstv %s1365
    %v1367 = vmul.f32 %v1366, %v1357
    %v1368 = vmul.f32 %v1366, %v1358
    %v1369 = vadd.f32 %v1343, %v1367
    %v1370 = vadd.f32 %v1344, %v1368
    %s1371 = sld [smem:[#allocation8 + $0x3b]]
    %v1372 = vstv %s1371
    %v1373 = vmul.f32 %v1372, %v1357
    %v1374 = vmul.f32 %v1372, %v1358
    %v1375 = vadd.f32 %v1349, %v1373
    %v1376 = vadd.f32 %v1350, %v1374
    %1377 = vrot.lane.b32.xlu0 %v1217, 113
    %v1378 = vpop.permute.xlu0 %1377
    %1379 = vrot.lane.b32.xlu0 %v1218, 113
    %v1380 = vpop.permute.xlu0 %1379
    %v1381 = vsel %vm439, %v1378, %v1380
    %v1382 = vsel %vm439, %v1380, %v1378
    %v1383 = vmul.f32 %v1381, %v446
    %v1384 = vmul.f32 %v1382, %v450
    %s1385 = sld [smem:[#allocation8 + $0x6]]
    %v1386 = vstv %s1385
    %v1387 = vmul.f32 %v1386, %v1383
    %v1388 = vmul.f32 %v1386, %v1384
    %v1389 = vadd.f32 %v1363, %v1387
    %v1390 = vadd.f32 %v1364, %v1388
    %s1391 = sld [smem:[#allocation8 + $0x21]]
    %v1392 = vstv %s1391
    %v1393 = vmul.f32 %v1392, %v1383
    %v1394 = vmul.f32 %v1392, %v1384
    %v1395 = vadd.f32 %v1369, %v1393
    %v1396 = vadd.f32 %v1370, %v1394
    %s1397 = sld [smem:[#allocation8 + $0x3c]]
    %v1398 = vstv %s1397
    %v1399 = vmul.f32 %v1398, %v1383
    %v1400 = vmul.f32 %v1398, %v1384
    %v1401 = vadd.f32 %v1375, %v1399
    %v1402 = vadd.f32 %v1376, %v1400
    %1403 = vrot.lane.b32.xlu0 %v1217, 112
    %v1404 = vpop.permute.xlu0 %1403
    %1405 = vrot.lane.b32.xlu0 %v1218, 112
    %v1406 = vpop.permute.xlu0 %1405
    %v1407 = vsel %vm477, %v1404, %v1406
    %v1408 = vsel %vm477, %v1406, %v1404
    %v1409 = vmul.f32 %v1407, %v484
    %v1410 = vmul.f32 %v1408, %v488
    %s1411 = sld [smem:[#allocation8 + $0x7]]
    %v1412 = vstv %s1411
    %v1413 = vmul.f32 %v1412, %v1409
    %v1414 = vmul.f32 %v1412, %v1410
    %v1415 = vadd.f32 %v1389, %v1413
    %v1416 = vadd.f32 %v1390, %v1414
    %s1417 = sld [smem:[#allocation8 + $0x22]]
    %v1418 = vstv %s1417
    %v1419 = vmul.f32 %v1418, %v1409
    %v1420 = vmul.f32 %v1418, %v1410
    %v1421 = vadd.f32 %v1395, %v1419
    %v1422 = vadd.f32 %v1396, %v1420
    %s1423 = sld [smem:[#allocation8 + $0x3d]]
    %v1424 = vstv %s1423
    %v1425 = vmul.f32 %v1424, %v1409
    %v1426 = vmul.f32 %v1424, %v1410
    %v1427 = vadd.f32 %v1401, %v1425
    %v1428 = vadd.f32 %v1402, %v1426
    %1429 = vrot.lane.b32.xlu0 %v1217, 111
    %v1430 = vpop.permute.xlu0 %1429
    %1431 = vrot.lane.b32.xlu0 %v1218, 111
    %v1432 = vpop.permute.xlu0 %1431
    %v1433 = vsel %vm515, %v1430, %v1432
    %v1434 = vsel %vm515, %v1432, %v1430
    %v1435 = vmul.f32 %v1433, %v522
    %v1436 = vmul.f32 %v1434, %v526
    %s1437 = sld [smem:[#allocation8 + $0x8]]
    %v1438 = vstv %s1437
    %v1439 = vmul.f32 %v1438, %v1435
    %v1440 = vmul.f32 %v1438, %v1436
    %v1441 = vadd.f32 %v1415, %v1439
    %v1442 = vadd.f32 %v1416, %v1440
    %s1443 = sld [smem:[#allocation8 + $0x23]]
    %v1444 = vstv %s1443
    %v1445 = vmul.f32 %v1444, %v1435
    %v1446 = vmul.f32 %v1444, %v1436
    %v1447 = vadd.f32 %v1421, %v1445
    %v1448 = vadd.f32 %v1422, %v1446
    %s1449 = sld [smem:[#allocation8 + $0x3e]]
    %v1450 = vstv %s1449
    %v1451 = vmul.f32 %v1450, %v1435
    %v1452 = vmul.f32 %v1450, %v1436
    %v1453 = vadd.f32 %v1427, %v1451
    %v1454 = vadd.f32 %v1428, %v1452
    %1455 = vrot.lane.b32.xlu0 %v1219, 17
    %v1456 = vpop.permute.xlu0 %1455
    %1457 = vrot.lane.b32.xlu0 %v1220, 17
    %v1458 = vpop.permute.xlu0 %1457
    %v1459 = vsel %vm150, %v1456, %v1458
    %v1460 = vsel %vm150, %v1458, %v1456
    %v1461 = vmul.f32 %v1460, %v157
    %v1462 = vmul.f32 %v1459, %v161
    %s1463 = sld [smem:[#allocation8 + $0x9]]
    %v1464 = vstv %s1463
    %v1465 = vmul.f32 %v1464, %v1461
    %v1466 = vmul.f32 %v1464, %v1462
    %v1467 = vadd.f32 %v1441, %v1465
    %v1468 = vadd.f32 %v1442, %v1466
    %s1469 = sld [smem:[#allocation8 + $0x24]]
    %v1470 = vstv %s1469
    %v1471 = vmul.f32 %v1470, %v1461
    %v1472 = vmul.f32 %v1470, %v1462
    %v1473 = vadd.f32 %v1447, %v1471
    %v1474 = vadd.f32 %v1448, %v1472
    %s1475 = sld [smem:[#allocation8 + $0x3f]]
    %v1476 = vstv %s1475
    %v1477 = vmul.f32 %v1476, %v1461
    %v1478 = vmul.f32 %v1476, %v1462
    %v1479 = vadd.f32 %v1453, %v1477
    %v1480 = vadd.f32 %v1454, %v1478
    %1481 = vrot.lane.b32.xlu0 %v1219, 16
    %v1482 = vpop.permute.xlu0 %1481
    %1483 = vrot.lane.b32.xlu0 %v1220, 16
    %v1484 = vpop.permute.xlu0 %1483
    %v1485 = vsel %vm188, %v1482, %v1484
    %v1486 = vsel %vm188, %v1484, %v1482
    %v1487 = vmul.f32 %v1486, %v195
    %v1488 = vmul.f32 %v1485, %v199
    %s1489 = sld [smem:[#allocation8 + $0xa]]
    %v1490 = vstv %s1489
    %v1491 = vmul.f32 %v1490, %v1487
    %v1492 = vmul.f32 %v1490, %v1488
    %v1493 = vadd.f32 %v1467, %v1491
    %v1494 = vadd.f32 %v1468, %v1492
    %s1495 = sld [smem:[#allocation8 + $0x25]]
    %v1496 = vstv %s1495
    %v1497 = vmul.f32 %v1496, %v1487
    %v1498 = vmul.f32 %v1496, %v1488
    %v1499 = vadd.f32 %v1473, %v1497
    %v1500 = vadd.f32 %v1474, %v1498
    %s1501 = sld [smem:[#allocation8 + $0x40]]
    %v1502 = vstv %s1501
    %v1503 = vmul.f32 %v1502, %v1487
    %v1504 = vmul.f32 %v1502, %v1488
    %v1505 = vadd.f32 %v1479, %v1503
    %v1506 = vadd.f32 %v1480, %v1504
    %1507 = vrot.lane.b32.xlu0 %v1219, 15
    %v1508 = vpop.permute.xlu0 %1507
    %1509 = vrot.lane.b32.xlu0 %v1220, 15
    %v1510 = vpop.permute.xlu0 %1509
    %v1511 = vsel %vm226, %v1508, %v1510
    %v1512 = vsel %vm226, %v1510, %v1508
    %v1513 = vmul.f32 %v1512, %v233
    %v1514 = vmul.f32 %v1511, %v237
    %s1515 = sld [smem:[#allocation8 + $0xb]]
    %v1516 = vstv %s1515
    %v1517 = vmul.f32 %v1516, %v1513
    %v1518 = vmul.f32 %v1516, %v1514
    %v1519 = vadd.f32 %v1493, %v1517
    %v1520 = vadd.f32 %v1494, %v1518
    %s1521 = sld [smem:[#allocation8 + $0x26]]
    %v1522 = vstv %s1521
    %v1523 = vmul.f32 %v1522, %v1513
    %v1524 = vmul.f32 %v1522, %v1514
    %v1525 = vadd.f32 %v1499, %v1523
    %v1526 = vadd.f32 %v1500, %v1524
    %s1527 = sld [smem:[#allocation8 + $0x41]]
    %v1528 = vstv %s1527
    %v1529 = vmul.f32 %v1528, %v1513
    %v1530 = vmul.f32 %v1528, %v1514
    %v1531 = vadd.f32 %v1505, %v1529
    %v1532 = vadd.f32 %v1506, %v1530
    %1533 = vrot.lane.b32.xlu0 %v1219, 1
    %v1534 = vpop.permute.xlu0 %1533
    %1535 = vrot.lane.b32.xlu0 %v1220, 1
    %v1536 = vpop.permute.xlu0 %1535
    %v1537 = vsel %vm264, %v1534, %v1536
    %v1538 = vsel %vm264, %v1536, %v1534
    %v1539 = vmul.f32 %v1538, %v271
    %v1540 = vmul.f32 %v1537, %v275
    %s1541 = sld [smem:[#allocation8 + $0xc]]
    %v1542 = vstv %s1541
    %v1543 = vmul.f32 %v1542, %v1539
    %v1544 = vmul.f32 %v1542, %v1540
    %v1545 = vadd.f32 %v1519, %v1543
    %v1546 = vadd.f32 %v1520, %v1544
    %s1547 = sld [smem:[#allocation8 + $0x27]]
    %v1548 = vstv %s1547
    %v1549 = vmul.f32 %v1548, %v1539
    %v1550 = vmul.f32 %v1548, %v1540
    %v1551 = vadd.f32 %v1525, %v1549
    %v1552 = vadd.f32 %v1526, %v1550
    %s1553 = sld [smem:[#allocation8 + $0x42]]
    %v1554 = vstv %s1553
    %v1555 = vmul.f32 %v1554, %v1539
    %v1556 = vmul.f32 %v1554, %v1540
    %v1557 = vadd.f32 %v1531, %v1555
    %v1558 = vadd.f32 %v1532, %v1556
    %s1559 = sld [smem:[#allocation8 + $0xd]]
    %v1560 = vstv %s1559
    %v1561 = vmul.f32 %v1560, %v1219
    %v1562 = vmul.f32 %v1560, %v1220
    %v1563 = vadd.f32 %v1545, %v1561
    %v1564 = vadd.f32 %v1546, %v1562
    %s1565 = sld [smem:[#allocation8 + $0x28]]
    %v1566 = vstv %s1565
    %v1567 = vmul.f32 %v1566, %v1219
    %v1568 = vmul.f32 %v1566, %v1220
    %v1569 = vadd.f32 %v1551, %v1567
    %v1570 = vadd.f32 %v1552, %v1568
    %s1571 = sld [smem:[#allocation8 + $0x43]]
    %v1572 = vstv %s1571
    %v1573 = vmul.f32 %v1572, %v1219
    %v1574 = vmul.f32 %v1572, %v1220
    %v1575 = vadd.f32 %v1557, %v1573
    %v1576 = vadd.f32 %v1558, %v1574
    %1577 = vrot.lane.b32.xlu0 %v1219, 127
    %v1578 = vpop.permute.xlu0 %1577
    %1579 = vrot.lane.b32.xlu0 %v1220, 127
    %v1580 = vpop.permute.xlu0 %1579
    %v1581 = vsel %vm401, %v1578, %v1580
    %v1582 = vsel %vm401, %v1580, %v1578
    %v1583 = vmul.f32 %v1581, %v408
    %v1584 = vmul.f32 %v1582, %v412
    %s1585 = sld [smem:[#allocation8 + $0xe]]
    %v1586 = vstv %s1585
    %v1587 = vmul.f32 %v1586, %v1583
    %v1588 = vmul.f32 %v1586, %v1584
    %v1589 = vadd.f32 %v1563, %v1587
    %v1590 = vadd.f32 %v1564, %v1588
    %s1591 = sld [smem:[#allocation8 + $0x29]]
    %v1592 = vstv %s1591
    %v1593 = vmul.f32 %v1592, %v1583
    %v1594 = vmul.f32 %v1592, %v1584
    %v1595 = vadd.f32 %v1569, %v1593
    %v1596 = vadd.f32 %v1570, %v1594
    %s1597 = sld [smem:[#allocation8 + $0x44]]
    %v1598 = vstv %s1597
    %v1599 = vmul.f32 %v1598, %v1583
    %v1600 = vmul.f32 %v1598, %v1584
    %v1601 = vadd.f32 %v1575, %v1599
    %v1602 = vadd.f32 %v1576, %v1600
    %1603 = vrot.lane.b32.xlu0 %v1219, 113
    %v1604 = vpop.permute.xlu0 %1603
    %1605 = vrot.lane.b32.xlu0 %v1220, 113
    %v1606 = vpop.permute.xlu0 %1605
    %v1607 = vsel %vm439, %v1604, %v1606
    %v1608 = vsel %vm439, %v1606, %v1604
    %v1609 = vmul.f32 %v1607, %v446
    %v1610 = vmul.f32 %v1608, %v450
    %s1611 = sld [smem:[#allocation8 + $0xf]]
    %v1612 = vstv %s1611
    %v1613 = vmul.f32 %v1612, %v1609
    %v1614 = vmul.f32 %v1612, %v1610
    %v1615 = vadd.f32 %v1589, %v1613
    %v1616 = vadd.f32 %v1590, %v1614
    %s1617 = sld [smem:[#allocation8 + $0x2a]]
    %v1618 = vstv %s1617
    %v1619 = vmul.f32 %v1618, %v1609
    %v1620 = vmul.f32 %v1618, %v1610
    %v1621 = vadd.f32 %v1595, %v1619
    %v1622 = vadd.f32 %v1596, %v1620
    %s1623 = sld [smem:[#allocation8 + $0x45]]
    %v1624 = vstv %s1623
    %v1625 = vmul.f32 %v1624, %v1609
    %v1626 = vmul.f32 %v1624, %v1610
    %v1627 = vadd.f32 %v1601, %v1625
    %v1628 = vadd.f32 %v1602, %v1626
    %1629 = vrot.lane.b32.xlu0 %v1219, 112
    %v1630 = vpop.permute.xlu0 %1629
    %1631 = vrot.lane.b32.xlu0 %v1220, 112
    %v1632 = vpop.permute.xlu0 %1631
    %v1633 = vsel %vm477, %v1630, %v1632
    %v1634 = vsel %vm477, %v1632, %v1630
    %v1635 = vmul.f32 %v1633, %v484
    %v1636 = vmul.f32 %v1634, %v488
    %s1637 = sld [smem:[#allocation8 + $0x10]]
    %v1638 = vstv %s1637
    %v1639 = vmul.f32 %v1638, %v1635
    %v1640 = vmul.f32 %v1638, %v1636
    %v1641 = vadd.f32 %v1615, %v1639
    %v1642 = vadd.f32 %v1616, %v1640
    %s1643 = sld [smem:[#allocation8 + $0x2b]]
    %v1644 = vstv %s1643
    %v1645 = vmul.f32 %v1644, %v1635
    %v1646 = vmul.f32 %v1644, %v1636
    %v1647 = vadd.f32 %v1621, %v1645
    %v1648 = vadd.f32 %v1622, %v1646
    %s1649 = sld [smem:[#allocation8 + $0x46]]
    %v1650 = vstv %s1649
    %v1651 = vmul.f32 %v1650, %v1635
    %v1652 = vmul.f32 %v1650, %v1636
    %v1653 = vadd.f32 %v1627, %v1651
    %v1654 = vadd.f32 %v1628, %v1652
    %1655 = vrot.lane.b32.xlu0 %v1219, 111
    %v1656 = vpop.permute.xlu0 %1655
    %1657 = vrot.lane.b32.xlu0 %v1220, 111
    %v1658 = vpop.permute.xlu0 %1657
    %v1659 = vsel %vm515, %v1656, %v1658
    %v1660 = vsel %vm515, %v1658, %v1656
    %v1661 = vmul.f32 %v1659, %v522
    %v1662 = vmul.f32 %v1660, %v526
    %s1663 = sld [smem:[#allocation8 + $0x11]]
    %v1664 = vstv %s1663
    %v1665 = vmul.f32 %v1664, %v1661
    %v1666 = vmul.f32 %v1664, %v1662
    %v1667 = vadd.f32 %v1641, %v1665
    %v1668 = vadd.f32 %v1642, %v1666
    %s1669 = sld [smem:[#allocation8 + $0x2c]]
    %v1670 = vstv %s1669
    %v1671 = vmul.f32 %v1670, %v1661
    %v1672 = vmul.f32 %v1670, %v1662
    %v1673 = vadd.f32 %v1647, %v1671
    %v1674 = vadd.f32 %v1648, %v1672
    %s1675 = sld [smem:[#allocation8 + $0x47]]
    %v1676 = vstv %s1675
    %v1677 = vmul.f32 %v1676, %v1661
    %v1678 = vmul.f32 %v1676, %v1662
    %v1679 = vadd.f32 %v1653, %v1677
    %v1680 = vadd.f32 %v1654, %v1678
    %1681 = vrot.lane.b32.xlu0 %v1221, 17
    %v1682 = vpop.permute.xlu0 %1681
    %1683 = vrot.lane.b32.xlu0 %v1222, 17
    %v1684 = vpop.permute.xlu0 %1683
    %v1685 = vsel %vm150, %v1682, %v1684
    %v1686 = vsel %vm150, %v1684, %v1682
    %v1687 = vmul.f32 %v1686, %v157
    %v1688 = vmul.f32 %v1685, %v161
    %s1689 = sld [smem:[#allocation8 + $0x12]]
    %v1690 = vstv %s1689
    %v1691 = vmul.f32 %v1690, %v1687
    %v1692 = vmul.f32 %v1690, %v1688
    %v1693 = vadd.f32 %v1667, %v1691
    %v1694 = vadd.f32 %v1668, %v1692
    %s1695 = sld [smem:[#allocation8 + $0x2d]]
    %v1696 = vstv %s1695
    %v1697 = vmul.f32 %v1696, %v1687
    %v1698 = vmul.f32 %v1696, %v1688
    %v1699 = vadd.f32 %v1673, %v1697
    %v1700 = vadd.f32 %v1674, %v1698
    %s1701 = sld [smem:[#allocation8 + $0x48]]
    %v1702 = vstv %s1701
    %v1703 = vmul.f32 %v1702, %v1687
    %v1704 = vmul.f32 %v1702, %v1688
    %v1705 = vadd.f32 %v1679, %v1703
    %v1706 = vadd.f32 %v1680, %v1704
    %1707 = vrot.lane.b32.xlu0 %v1221, 16
    %v1708 = vpop.permute.xlu0 %1707
    %1709 = vrot.lane.b32.xlu0 %v1222, 16
    %v1710 = vpop.permute.xlu0 %1709
    %v1711 = vsel %vm188, %v1708, %v1710
    %v1712 = vsel %vm188, %v1710, %v1708
    %v1713 = vmul.f32 %v1712, %v195
    %v1714 = vmul.f32 %v1711, %v199
    %s1715 = sld [smem:[#allocation8 + $0x13]]
    %v1716 = vstv %s1715
    %v1717 = vmul.f32 %v1716, %v1713
    %v1718 = vmul.f32 %v1716, %v1714
    %v1719 = vadd.f32 %v1693, %v1717
    %v1720 = vadd.f32 %v1694, %v1718
    %s1721 = sld [smem:[#allocation8 + $0x2e]]
    %v1722 = vstv %s1721
    %v1723 = vmul.f32 %v1722, %v1713
    %v1724 = vmul.f32 %v1722, %v1714
    %v1725 = vadd.f32 %v1699, %v1723
    %v1726 = vadd.f32 %v1700, %v1724
    %s1727 = sld [smem:[#allocation8 + $0x49]]
    %v1728 = vstv %s1727
    %v1729 = vmul.f32 %v1728, %v1713
    %v1730 = vmul.f32 %v1728, %v1714
    %v1731 = vadd.f32 %v1705, %v1729
    %v1732 = vadd.f32 %v1706, %v1730
    %1733 = vrot.lane.b32.xlu0 %v1221, 15
    %v1734 = vpop.permute.xlu0 %1733
    %1735 = vrot.lane.b32.xlu0 %v1222, 15
    %v1736 = vpop.permute.xlu0 %1735
    %v1737 = vsel %vm226, %v1734, %v1736
    %v1738 = vsel %vm226, %v1736, %v1734
    %v1739 = vmul.f32 %v1738, %v233
    %v1740 = vmul.f32 %v1737, %v237
    %s1741 = sld [smem:[#allocation8 + $0x14]]
    %v1742 = vstv %s1741
    %v1743 = vmul.f32 %v1742, %v1739
    %v1744 = vmul.f32 %v1742, %v1740
    %v1745 = vadd.f32 %v1719, %v1743
    %v1746 = vadd.f32 %v1720, %v1744
    %s1747 = sld [smem:[#allocation8 + $0x2f]]
    %v1748 = vstv %s1747
    %v1749 = vmul.f32 %v1748, %v1739
    %v1750 = vmul.f32 %v1748, %v1740
    %v1751 = vadd.f32 %v1725, %v1749
    %v1752 = vadd.f32 %v1726, %v1750
    %s1753 = sld [smem:[#allocation8 + $0x4a]]
    %v1754 = vstv %s1753
    %v1755 = vmul.f32 %v1754, %v1739
    %v1756 = vmul.f32 %v1754, %v1740
    %v1757 = vadd.f32 %v1731, %v1755
    %v1758 = vadd.f32 %v1732, %v1756
    %1759 = vrot.lane.b32.xlu0 %v1221, 1
    %v1760 = vpop.permute.xlu0 %1759
    %1761 = vrot.lane.b32.xlu0 %v1222, 1
    %v1762 = vpop.permute.xlu0 %1761
    %v1763 = vsel %vm264, %v1760, %v1762
    %v1764 = vsel %vm264, %v1762, %v1760
    %v1765 = vmul.f32 %v1764, %v271
    %v1766 = vmul.f32 %v1763, %v275
    %s1767 = sld [smem:[#allocation8 + $0x15]]
    %v1768 = vstv %s1767
    %v1769 = vmul.f32 %v1768, %v1765
    %v1770 = vmul.f32 %v1768, %v1766
    %v1771 = vadd.f32 %v1745, %v1769
    %v1772 = vadd.f32 %v1746, %v1770
    %s1773 = sld [smem:[#allocation8 + $0x30]]
    %v1774 = vstv %s1773
    %v1775 = vmul.f32 %v1774, %v1765
    %v1776 = vmul.f32 %v1774, %v1766
    %v1777 = vadd.f32 %v1751, %v1775
    %v1778 = vadd.f32 %v1752, %v1776
    %s1779 = sld [smem:[#allocation8 + $0x4b]]
    %v1780 = vstv %s1779
    %v1781 = vmul.f32 %v1780, %v1765
    %v1782 = vmul.f32 %v1780, %v1766
    %v1783 = vadd.f32 %v1757, %v1781
    %v1784 = vadd.f32 %v1758, %v1782
    %s1785 = sld [smem:[#allocation8 + $0x16]]
    %v1786 = vstv %s1785
    %v1787 = vmul.f32 %v1786, %v1221
    %v1788 = vmul.f32 %v1786, %v1222
    %v1789 = vadd.f32 %v1771, %v1787
    %v1790 = vadd.f32 %v1772, %v1788
    %s1791 = sld [smem:[#allocation8 + $0x31]]
    %v1792 = vstv %s1791
    %v1793 = vmul.f32 %v1792, %v1221
    %v1794 = vmul.f32 %v1792, %v1222
    %v1795 = vadd.f32 %v1777, %v1793
    %v1796 = vadd.f32 %v1778, %v1794
    %s1797 = sld [smem:[#allocation8 + $0x4c]]
    %v1798 = vstv %s1797
    %v1799 = vmul.f32 %v1798, %v1221
    %v1800 = vmul.f32 %v1798, %v1222
    %v1801 = vadd.f32 %v1783, %v1799
    %v1802 = vadd.f32 %v1784, %v1800
    %1803 = vrot.lane.b32.xlu0 %v1221, 127
    %v1804 = vpop.permute.xlu0 %1803
    %1805 = vrot.lane.b32.xlu0 %v1222, 127
    %v1806 = vpop.permute.xlu0 %1805
    %v1807 = vsel %vm401, %v1804, %v1806
    %v1808 = vsel %vm401, %v1806, %v1804
    %v1809 = vmul.f32 %v1807, %v408
    %v1810 = vmul.f32 %v1808, %v412
    %s1811 = sld [smem:[#allocation8 + $0x17]]
    %v1812 = vstv %s1811
    %v1813 = vmul.f32 %v1812, %v1809
    %v1814 = vmul.f32 %v1812, %v1810
    %v1815 = vadd.f32 %v1789, %v1813
    %v1816 = vadd.f32 %v1790, %v1814
    %s1817 = sld [smem:[#allocation8 + $0x32]]
    %v1818 = vstv %s1817
    %v1819 = vmul.f32 %v1818, %v1809
    %v1820 = vmul.f32 %v1818, %v1810
    %v1821 = vadd.f32 %v1795, %v1819
    %v1822 = vadd.f32 %v1796, %v1820
    %s1823 = sld [smem:[#allocation8 + $0x4d]]
    %v1824 = vstv %s1823
    %v1825 = vmul.f32 %v1824, %v1809
    %v1826 = vmul.f32 %v1824, %v1810
    %v1827 = vadd.f32 %v1801, %v1825
    %v1828 = vadd.f32 %v1802, %v1826
    %1829 = vrot.lane.b32.xlu0 %v1221, 113
    %v1830 = vpop.permute.xlu0 %1829
    %1831 = vrot.lane.b32.xlu0 %v1222, 113
    %v1832 = vpop.permute.xlu0 %1831
    %v1833 = vsel %vm439, %v1830, %v1832
    %v1834 = vsel %vm439, %v1832, %v1830
    %v1835 = vmul.f32 %v1833, %v446
    %v1836 = vmul.f32 %v1834, %v450
    %s1837 = sld [smem:[#allocation8 + $0x18]]
    %v1838 = vstv %s1837
    %v1839 = vmul.f32 %v1838, %v1835
    %v1840 = vmul.f32 %v1838, %v1836
    %v1841 = vadd.f32 %v1815, %v1839
    %v1842 = vadd.f32 %v1816, %v1840
    %s1843 = sld [smem:[#allocation8 + $0x33]]
    %v1844 = vstv %s1843
    %v1845 = vmul.f32 %v1844, %v1835
    %v1846 = vmul.f32 %v1844, %v1836
    %v1847 = vadd.f32 %v1821, %v1845
    %v1848 = vadd.f32 %v1822, %v1846
    %s1849 = sld [smem:[#allocation8 + $0x4e]]
    %v1850 = vstv %s1849
    %v1851 = vmul.f32 %v1850, %v1835
    %v1852 = vmul.f32 %v1850, %v1836
    %v1853 = vadd.f32 %v1827, %v1851
    %v1854 = vadd.f32 %v1828, %v1852
    %1855 = vrot.lane.b32.xlu0 %v1221, 112
    %v1856 = vpop.permute.xlu0 %1855
    %1857 = vrot.lane.b32.xlu0 %v1222, 112
    %v1858 = vpop.permute.xlu0 %1857
    %v1859 = vsel %vm477, %v1856, %v1858
    %v1860 = vsel %vm477, %v1858, %v1856
    %v1861 = vmul.f32 %v1859, %v484
    %v1862 = vmul.f32 %v1860, %v488
    %s1863 = sld [smem:[#allocation8 + $0x19]]
    %v1864 = vstv %s1863
    %v1865 = vmul.f32 %v1864, %v1861
    %v1866 = vmul.f32 %v1864, %v1862
    %v1867 = vadd.f32 %v1841, %v1865
    %v1868 = vadd.f32 %v1842, %v1866
    %s1869 = sld [smem:[#allocation8 + $0x34]]
    %v1870 = vstv %s1869
    %v1871 = vmul.f32 %v1870, %v1861
    %v1872 = vmul.f32 %v1870, %v1862
    %v1873 = vadd.f32 %v1847, %v1871
    %v1874 = vadd.f32 %v1848, %v1872
    %s1875 = sld [smem:[#allocation8 + $0x4f]]
    %v1876 = vstv %s1875
    %v1877 = vmul.f32 %v1876, %v1861
    %v1878 = vmul.f32 %v1876, %v1862
    %v1879 = vadd.f32 %v1853, %v1877
    %v1880 = vadd.f32 %v1854, %v1878
    %1881 = vrot.lane.b32.xlu0 %v1221, 111
    %v1882 = vpop.permute.xlu0 %1881
    %1883 = vrot.lane.b32.xlu0 %v1222, 111
    %v1884 = vpop.permute.xlu0 %1883
    %v1885 = vsel %vm515, %v1882, %v1884
    %v1886 = vsel %vm515, %v1884, %v1882
    %v1887 = vmul.f32 %v1885, %v522
    %v1888 = vmul.f32 %v1886, %v526
    %s1889 = sld [smem:[#allocation8 + $0x1a]]
    %v1890 = vstv %s1889
    %v1891 = vmul.f32 %v1890, %v1887
    %v1892 = vmul.f32 %v1890, %v1888
    %v1893 = vadd.f32 %v1867, %v1891
    %v1894 = vadd.f32 %v1868, %v1892
    %s1895 = sld [smem:[#allocation8 + $0x35]]
    %v1896 = vstv %s1895
    %v1897 = vmul.f32 %v1896, %v1887
    %v1898 = vmul.f32 %v1896, %v1888
    %v1899 = vadd.f32 %v1873, %v1897
    %v1900 = vadd.f32 %v1874, %v1898
    %s1901 = sld [smem:[#allocation8 + $0x50]]
    %v1902 = vstv %s1901
    %v1903 = vmul.f32 %v1902, %v1887
    %v1904 = vmul.f32 %v1902, %v1888
    %v1905 = vadd.f32 %v1879, %v1903
    %v1906 = vadd.f32 %v1880, %v1904
    %v1907 = vmax.f32 %v1893, 0.0
    %v1908 = vmax.f32 %v1894, 0.0
    %v1909 = vadd.f32 %v1907, %v134
    %v1910 = vadd.f32 %v1908, %v141
    %v1913 = vcombine.low %v1909, %v1910
    %v1915 = vunpack.c.l.s4 1966171168
    %v1916 = vunpack.c.0.s8 %v1915
    %v1917 = vlaneseq
    %v1918 = vshrl.u32 %v1917, 7
    %v1919 = vsub.s32 %v1916, %v1918
    %v1920 = vrot.slane %v1913, %v1919
    %v1921 = vcombine.high %v1920, %v1920
    %v1923 = vunpack.c.l.s4 1966171168
    %v1924 = vunpack.c.0.s8 %v1923
    %v1925 = vlaneseq
    %v1926 = vshrl.u32 %v1925, 7
    %v1927 = vsub.s32 %v1924, %v1926
    %v1928 = vrot.slane %v1920, %v1927
    %v1930 = vunpack.c.l.s4 1966171168
    %v1931 = vunpack.c.0.s8 %v1930
    %v1932 = vlaneseq
    %v1933 = vshrl.u32 %v1932, 7
    %v1934 = vsub.s32 %v1931, %v1933
    %v1935 = vrot.slane %v1921, %v1934
    %v1938 = vlaneseq
    %vm1939 = vcmp.ge.s32.totalorder %v1938, 0
    %vm1940 = vcmp.lt.s32.totalorder %v1938, 256
    %vm1941 = vmand %vm1939, %vm1940
    %1942 = vst.msk [vmem:[%s6] ss:$4 sm:$0x3] %vm1941, %v1928
    %s1943 = scalar_lea.vmem %s6, 8
    %1944 = vst.msk [vmem:[%s1943] ss:$4 sm:$0x3] %vm1941, %v1935
    %v1945 = vmax.f32 %v1899, 0.0
    %v1946 = vmax.f32 %v1900, 0.0
    %v1947 = vadd.f32 %v1945, %v566
    %v1948 = vadd.f32 %v1946, %v573
    %v1951 = vcombine.low %v1947, %v1948
    %v1953 = vunpack.c.l.s4 1966171168
    %v1954 = vunpack.c.0.s8 %v1953
    %v1955 = vlaneseq
    %v1956 = vshrl.u32 %v1955, 7
    %v1957 = vsub.s32 %v1954, %v1956
    %v1958 = vrot.slane %v1951, %v1957
    %v1959 = vcombine.high %v1958, %v1958
    %v1961 = vunpack.c.l.s4 1966171168
    %v1962 = vunpack.c.0.s8 %v1961
    %v1963 = vlaneseq
    %v1964 = vshrl.u32 %v1963, 7
    %v1965 = vsub.s32 %v1962, %v1964
    %v1966 = vrot.slane %v1958, %v1965
    %v1968 = vunpack.c.l.s4 1966171168
    %v1969 = vunpack.c.0.s8 %v1968
    %v1970 = vlaneseq
    %v1971 = vshrl.u32 %v1970, 7
    %v1972 = vsub.s32 %v1969, %v1971
    %v1973 = vrot.slane %v1959, %v1972
    %s1976 = scalar_lea.vmem %s6, 1
    %1977 = vst.msk [vmem:[%s1976] ss:$4 sm:$0x3] %vm1941, %v1966
    %s1978 = scalar_lea.vmem %s6, 9
    %1979 = vst.msk [vmem:[%s1978] ss:$4 sm:$0x3] %vm1941, %v1973
    %v1980 = vmax.f32 %v1905, 0.0
    %v1981 = vmax.f32 %v1906, 0.0
    %v1982 = vadd.f32 %v1980, %v900
    %v1983 = vadd.f32 %v1981, %v907
    %v1986 = vcombine.low %v1982, %v1983
    %v1988 = vunpack.c.l.s4 1966171168
    %v1989 = vunpack.c.0.s8 %v1988
    %v1990 = vlaneseq
    %v1991 = vshrl.u32 %v1990, 7
    %v1992 = vsub.s32 %v1989, %v1991
    %v1993 = vrot.slane %v1986, %v1992
    %v1994 = vcombine.high %v1993, %v1993
    %v1996 = vunpack.c.l.s4 1966171168
    %v1997 = vunpack.c.0.s8 %v1996
    %v1998 = vlaneseq
    %v1999 = vshrl.u32 %v1998, 7
    %v2000 = vsub.s32 %v1997, %v1999
    %v2001 = vrot.slane %v1993, %v2000
    %v2003 = vunpack.c.l.s4 1966171168
    %v2004 = vunpack.c.0.s8 %v2003
    %v2005 = vlaneseq
    %v2006 = vshrl.u32 %v2005, 7
    %v2007 = vsub.s32 %v2004, %v2006
    %v2008 = vrot.slane %v1994, %v2007
    %s2011 = scalar_lea.vmem %s6, 2
    %2012 = vst.msk [vmem:[%s2011] ss:$4 sm:$0x3] %vm1941, %v2001
    %s2013 = scalar_lea.vmem %s6, 10
    %2014 = vst.msk [vmem:[%s2013] ss:$4 sm:$0x3] %vm1941, %v2008
    // Predicated region
    $region46: #{tpu_custom_call.1} parent=1 // pred_check
      _
    $region47: #{tpu_custom_call.1} parent=1 // pred_check_branch
      %2016 = sbr.rel (0) target = $region49
    $region48: #{tpu_custom_call.1} parent=1 // pred_region
      _
    $region49: #{tpu_custom_call.1} parent=1 // pred_fallthru
      _
    // Predicated region
    $region50: #{tpu_custom_call.1} parent=1 // pred_check
      _
    $region51: #{tpu_custom_call.1} parent=1 // pred_check_branch
      %2018 = sbr.rel (0) target = $region53
    $region52: #{tpu_custom_call.1} parent=1 // pred_region
      _
    $region53: #{tpu_custom_call.1} parent=1 // pred_fallthru
      _
    %2019 = vsyncpa [#allocation3], 1
    %2020 = vsyncpa [#allocation4], 1
    %2021 = vsyncpa [#allocation7], 1
    %2022 = vsyncpa [#allocation10], 1

</llo_original>
